<compile_context>
chip_gen: v5e
topology: v5e:2x2
jax: 0.10.0
libtpu: 0.0.40
codegen_flags: <defaults>
</compile_context>

<pallas_src>
import math

import jax
import jax.numpy as jnp
from jax import lax
from jax.experimental import pallas as pl
from jax.experimental.pallas import tpu as pltpu

# ---------------- small config (consistent with the module) ----------------
B = 2            # batch
S = 8            # seq len
D = 32           # embed_dim
H = 8            # num_heads
HD = D // H      # head size = 4
E_SH = 4         # num_shared_experts
E_IM = 2         # num_modality_specific_experts
E_TOT = E_SH + E_IM
TOP_K = 2        # TOP_K < E_SH, TOP_K >= E_IM (image experts all selected)
FF = 4 * D       # expert / ffn hidden = 128
EPS = 1e-5

BS = B * S       # 16  tokens processed in the single fused grid step
BHS = B * H * S  # 128 (batch, head, query) rows for block-diagonal attention

# ------------- packed parameter layout (lane/sublane friendly) --------------
WD_LANES = 1152                  # W_d : [D, 1152] bf16 (weights with input dim D)
OFF_EXP_W1 = 0                   #   [:,    0: 768]  6 expert W1s, each [D, FF]
OFF_FFN_W1 = E_TOT * FF          #   [:,  768: 896]  FFN W1
OFF_QKV = OFF_FFN_W1 + FF        #   [:,  896: 992]  Wq|Wk|Wv
OFF_WO = 1024                    #   [:, 1024:1056]  Wo
OFF_WR = 1056                    #   [:, 1056:1062]  shared|image router weights

ROW_EXP_W2 = 0                   # W_c : [912, D] bf16 (weights with output dim D)
ROW_B2 = E_TOT * FF              #   [ 768: 774, :]  expert output biases (stacked rows)
ROW_FFN_W2 = 784                 #   [ 784: 912, :]  FFN W2 (16-aligned rows for bf16)
WC_ROWS = ROW_FFN_W2 + FF        # 912

BP_ROWS = 2                      # B_p : [2, 1152] f32
#   row 0 : GEMM biases, lane layout mirrors W_d.
#   row 1 : FFN output bias @ 0, LayerNorm params at 128-aligned slots.
OFF_FB2 = 0
OFF_G1 = 128
OFF_BE1 = 256
OFF_G2 = 384
OFF_BE2 = 512

# ------------- precomputed constant layouts ---------------------------------
# c_att : [BHS, 64] f32 :  row selector | head mask | batch bias
CA_SEL = 0                        # [:,  0:16]  sel_rq  (pick query token per (b,h,i) row)
CA_HM = BS                        # [:, 16:48]  head feature mask
CA_BB = BS + D                    # [:, 48:64]  0 same-batch / -1e30 cross-batch
CA_LANES = BS + D + BS            # 64
# c_qr  : [BS, BHS]        f32 :  column selector (sum heads back per token)
# c_exp : [E_TOT, E_TOT*FF] f32 :  expert gate -> hidden-lane selector

# ------------- packed output layout (single lane-dense [BS, 128] buffer) ----
AUX_LANES = 128
Y_OFF = 0
AW_OFF = D                        # 32 : full [BS, BS] head-averaged attention map
SHM_OFF = AW_OFF + BS             # 48
IMM_OFF = SHM_OFF + E_SH          # 52
SHP_OFF = IMM_OFF + E_IM          # 54
IMP_OFF = SHP_OFF + E_SH          # 58
USED = IMP_OFF + E_IM             # 60


# ------------------------------ kernel helpers ------------------------------
def _layernorm(x, g, b):
    mu = jnp.mean(x, axis=-1, keepdims=True)
    var = jnp.mean(jnp.square(x - mu), axis=-1, keepdims=True)
    return (x - mu) * jax.lax.rsqrt(var + EPS) * g + b


def _softmax_approx(x):
    # attention softmax: EUP approx reciprocal (denominator), otherwise idle slot
    x = x - jnp.max(x, axis=-1, keepdims=True)
    e = jnp.exp(x)
    return e * pl.reciprocal(jnp.sum(e, axis=-1, keepdims=True), approx=True)


def _softmax_exact(x):
    # router softmax: probabilities are returned / feed the LB loss -> exact divide
    x = x - jnp.max(x, axis=-1, keepdims=True)
    e = jnp.exp(x)
    return e / jnp.sum(e, axis=-1, keepdims=True)


def _gelu(x):
    # TODO(synk): PyTorch nn.GELU default is erf-exact; tanh approximation used
    # here for guaranteed Mosaic lowering (difference < 1e-3).
    return jax.nn.gelu(x, approximate=True)


def _mm_bf16(a, w):
    """f32 activation x bf16 weight -> bf16 MXU matmul, f32 accumulation."""
    return jnp.dot(a.astype(jnp.bfloat16), w, preferred_element_type=jnp.float32)


def _mm_f32(a, b):
    return jnp.dot(a, b, preferred_element_type=jnp.float32)


def _top2_indicator(probs):
    """Tie-broken exact top-2 indicator along the last axis (elementwise+reduce)."""
    n = probs.shape[-1]
    col = lax.broadcasted_iota(jnp.int32, probs.shape, 1)
    m1 = jnp.max(probs, axis=-1, keepdims=True)
    i1 = jnp.min(jnp.where(probs == m1, col, n), axis=-1, keepdims=True)
    top1 = col == i1
    rest = jnp.where(top1, -jnp.inf, probs)
    m2 = jnp.max(rest, axis=-1, keepdims=True)
    i2 = jnp.min(jnp.where(rest == m2, col, n), axis=-1, keepdims=True)
    top2 = col == i2
    return jnp.logical_or(top1, top2).astype(jnp.float32)


# ------------------------------ fused kernel -------------------------------
def encoder_kernel(x_ref, wd_ref, wc_ref, bp_ref, catt_ref, cqr_ref, cexp_ref,
                   out_ref):
    x = x_ref[...]                                                   # [BS, D]

    g1 = bp_ref[1:2, OFF_G1:OFF_G1 + D]
    be1 = bp_ref[1:2, OFF_BE1:OFF_BE1 + D]
    g2 = bp_ref[1:2, OFF_G2:OFF_G2 + D]
    be2 = bp_ref[1:2, OFF_BE2:OFF_BE2 + D]

    sel_rq = catt_ref[:, CA_SEL:CA_SEL + BS]                         # [BHS, BS]
    head_mask = catt_ref[:, CA_HM:CA_HM + D]                         # [BHS, D]
    batch_bias = catt_ref[:, CA_BB:CA_BB + BS]                       # [BHS, BS]
    sel_qr = cqr_ref[...]                                            # [BS, BHS]
    exp_sel = cexp_ref[...]                                          # [E_TOT, E_TOT*FF]

    # -------- self attention (pre-norm1, residual) --------
    xn = _layernorm(x, g1, be1)
    qkv = (_mm_bf16(xn, wd_ref[:, OFF_QKV:OFF_QKV + 3 * D])
           + bp_ref[0:1, OFF_QKV:OFF_QKV + 3 * D])                   # [BS, 3D]
    q = qkv[:, 0:D]
    k = qkv[:, D:2 * D]
    v = qkv[:, 2 * D:3 * D]

    scale = 1.0 / math.sqrt(HD)
    # row r = b*H*S + h*S + i ; q_stack keeps only head-h features of token (b,i)
    q_stack = _mm_f32(sel_rq, q) * head_mask                         # [BHS, D]
    scores = (lax.dot_general(q_stack, k, (((1,), (1,)), ((), ())),
                              preferred_element_type=jnp.float32) * scale
              + batch_bias)                                          # [BHS, BS]
    p = _softmax_approx(scores)                                      # per (b,h,query) row
    ctx = _mm_f32(p, v) * head_mask                                  # [BHS, D]

    # fused head-merge: one GEMM produces both the mean attention map and ctx
    merged = _mm_f32(sel_qr, jnp.concatenate([p, ctx], axis=-1))     # [BS, BS+D]
    attn_full = merged[:, 0:BS] * (1.0 / H)                          # [BS, BS]
    attn_ctx = merged[:, BS:BS + D]                                  # [BS, D]

    attn_out = (_mm_bf16(attn_ctx, wd_ref[:, OFF_WO:OFF_WO + D])
                + bp_ref[0:1, OFF_WO:OFF_WO + D])
    x1 = x + attn_out                                    # dropout = identity (eval)

    # -------- routers (pre-norm2) --------
    xn2 = _layernorm(x1, g2, be2)
    r_logits = (_mm_bf16(xn2, wd_ref[:, OFF_WR:OFF_WR + E_TOT])
                + bp_ref[0:1, OFF_WR:OFF_WR + E_TOT])                # [BS, E_TOT]
    sh_probs = _softmax_exact(r_logits[:, 0:E_SH])
    im_probs = _softmax_exact(r_logits[:, E_SH:E_TOT])
    sh_masks = sh_probs * _top2_indicator(sh_probs)      # exact top-2 of 4
    im_masks = im_probs                                  # top_k >= E_IM -> all selected
    gates = jnp.concatenate([sh_masks, im_masks], axis=-1)           # [BS, E_TOT]

    # -------- experts: all 6 fused into two GEMMs (b2 folded into W_c rows) --
    hid = _gelu(_mm_bf16(xn2, wd_ref[:, OFF_EXP_W1:OFF_EXP_W1 + E_TOT * FF])
                + bp_ref[0:1, OFF_EXP_W1:OFF_EXP_W1 + E_TOT * FF])   # [BS, 6*FF]
    gate_full = _mm_f32(gates, exp_sel)                              # [BS, 6*FF]
    kpad = jnp.zeros((BS, ROW_FFN_W2 - ROW_B2 - E_TOT), jnp.float32)
    lhs = jnp.concatenate([hid * gate_full, gates, kpad], axis=-1)   # [BS, 784]
    combined = _mm_bf16(lhs, wc_ref[0:ROW_FFN_W2, :])                # W2s + b2 rows
    x2 = x1 + combined                                   # residual (dropout identity)

    # -------- FFN (reference re-applies norm2, so do we) --------
    xn3 = _layernorm(x2, g2, be2)
    fh = _gelu(_mm_bf16(xn3, wd_ref[:, OFF_FFN_W1:OFF_FFN_W1 + FF])
               + bp_ref[0:1, OFF_FFN_W1:OFF_FFN_W1 + FF])            # [BS, FF]
    ffn = (_mm_bf16(fh, wc_ref[ROW_FFN_W2:ROW_FFN_W2 + FF, :])
           + bp_ref[1:2, OFF_FB2:OFF_FB2 + D])
    y = x2 + ffn

    # -------- single lane-dense packed output --------
    outpad = jnp.zeros((BS, AUX_LANES - USED), jnp.float32)
    out_ref[...] = jnp.concatenate(
        [y, attn_full, sh_masks, im_masks, sh_probs, im_probs, outpad], axis=-1)


# ------------------------------ wrapper ------------------------------------
def unified_modal_encoder(x, packed_params):
    """x: [B, S, D] f32. Returns (y, router_loss, [shared_masks, image_masks], attn_weights)."""
    w_d, w_c, b_p, c_att, c_qr, c_exp = packed_params
    xt = x.reshape(BS, D)

    out = pl.pallas_call(
        encoder_kernel,
        grid=(1,),            # batch collapsed: one step processes all B*S tokens
        in_specs=[
            pl.BlockSpec((BS, D), lambda i: (0, 0)),
            pl.BlockSpec((D, WD_LANES), lambda i: (0, 0)),
            pl.BlockSpec((WC_ROWS, D), lambda i: (0, 0)),
            pl.BlockSpec((BP_ROWS, WD_LANES), lambda i: (0, 0)),
            pl.BlockSpec((BHS, CA_LANES), lambda i: (0, 0)),
            pl.BlockSpec((BS, BHS), lambda i: (0, 0)),
            pl.BlockSpec((E_TOT, E_TOT * FF), lambda i: (0, 0)),
        ],
        out_specs=pl.BlockSpec((BS, AUX_LANES), lambda i: (0, 0)),
        out_shape=jax.ShapeDtypeStruct((BS, AUX_LANES), jnp.float32),
        compiler_params=pltpu.CompilerParams(dimension_semantics=("arbitrary",)),
    )(xt, w_d, w_c, b_p, c_att, c_qr, c_exp)

    y = out[:, Y_OFF:Y_OFF + D].reshape(B, S, D)
    attn4 = out[:, AW_OFF:AW_OFF + BS].reshape(B, S, B, S)
    attn_w = attn4[jnp.arange(B), :, jnp.arange(B), :]   # same-batch diagonal block
    sh_m = out[:, SHM_OFF:SHM_OFF + E_SH].reshape(B, S, E_SH)
    im_m = out[:, IMM_OFF:IMM_OFF + E_IM].reshape(B, S, E_IM)
    sh_p = out[:, SHP_OFF:SHP_OFF + E_SH].reshape(B, S, E_SH)
    im_p = out[:, IMP_OFF:IMP_OFF + E_IM].reshape(B, S, E_IM)

    # Switch-style load-balancing loss (tiny global reduction -> JAX glue).
    def lb_loss(probs, masks, n_exp):
        ind = (masks > 0).astype(jnp.float32)
        f = jnp.mean(ind, axis=(0, 1))       # dispatch fraction per expert
        pmean = jnp.mean(probs, axis=(0, 1))  # mean router prob per expert
        return n_exp * jnp.sum(f * pmean)

    total_router_loss = lb_loss(sh_p, sh_m, E_SH) + lb_loss(im_p, im_m, E_IM)
    return y, total_router_loss, [sh_m, im_m], attn_w


# --------------------------- deterministic init -----------------------------
def _trunc_normal(key, shape, std=0.02):
    return std * jax.random.truncated_normal(key, -2.0, 2.0, shape, jnp.float32)


def init_packed_params(key):
    """Builds logical weights (trunc_normal std=0.02, zero bias, LN ones/zeros),
    packs them into lane/sublane-aligned buffers (weights cast to bf16), and
    precomputes the constant selector matrices host-side."""
    ks = jax.random.split(key, 12)
    wq = _trunc_normal(ks[0], (D, D))
    wk = _trunc_normal(ks[1], (D, D))
    wv = _trunc_normal(ks[2], (D, D))
    wo = _trunc_normal(ks[3], (D, D))
    wr_sh = _trunc_normal(ks[4], (D, E_SH))
    wr_im = _trunc_normal(ks[5], (D, E_IM))
    sw1 = _trunc_normal(ks[6], (E_SH, D, FF))
    sw2 = _trunc_normal(ks[7], (E_SH, FF, D))
    iw1 = _trunc_normal(ks[8], (E_IM, D, FF))
    iw2 = _trunc_normal(ks[9], (E_IM, FF, D))
    fw1 = _trunc_normal(ks[10], (D, FF))
    fw2 = _trunc_normal(ks[11], (FF, D))
    gamma = jnp.ones((D,), jnp.float32)
    beta = jnp.zeros((D,), jnp.float32)

    exp_w1 = jnp.concatenate([sw1[e] for e in range(E_SH)]
                             + [iw1[e] for e in range(E_IM)], axis=1)    # [D, 6*FF]
    exp_w2 = jnp.concatenate([sw2[e] for e in range(E_SH)]
                             + [iw2[e] for e in range(E_IM)], axis=0)    # [6*FF, D]

    w_d = jnp.zeros((D, WD_LANES), jnp.float32)
    w_d = w_d.at[:, OFF_EXP_W1:OFF_EXP_W1 + E_TOT * FF].set(exp_w1)
    w_d = w_d.at[:, OFF_FFN_W1:OFF_FFN_W1 + FF].set(fw1)
    w_d = w_d.at[:, OFF_QKV:OFF_QKV + D].set(wq)
    w_d = w_d.at[:, OFF_QKV + D:OFF_QKV + 2 * D].set(wk)
    w_d = w_d.at[:, OFF_QKV + 2 * D:OFF_QKV + 3 * D].set(wv)
    w_d = w_d.at[:, OFF_WO:OFF_WO + D].set(wo)
    w_d = w_d.at[:, OFF_WR:OFF_WR + E_SH].set(wr_sh)
    w_d = w_d.at[:, OFF_WR + E_SH:OFF_WR + E_TOT].set(wr_im)

    w_c = jnp.zeros((WC_ROWS, D), jnp.float32)
    w_c = w_c.at[ROW_EXP_W2:ROW_EXP_W2 + E_TOT * FF, :].set(exp_w2)
    w_c = w_c.at[ROW_FFN_W2:ROW_FFN_W2 + FF, :].set(fw2)
    # rows ROW_B2:ROW_B2+E_TOT hold the expert output biases (zero at init).

    b_p = jnp.zeros((BP_ROWS, WD_LANES), jnp.float32)
    # row 0: GEMM biases (all zero at init), lane layout mirrors w_d.
    # row 1: FFN output bias (zero) + LayerNorm params.
    b_p = b_p.at[1, OFF_G1:OFF_G1 + D].set(gamma)
    b_p = b_p.at[1, OFF_BE1:OFF_BE1 + D].set(beta)
    b_p = b_p.at[1, OFF_G2:OFF_G2 + D].set(gamma)
    b_p = b_p.at[1, OFF_BE2:OFF_BE2 + D].set(beta)

    # ---- host-side constant selectors (hoisted out of the kernel) ----
    r = jnp.arange(BHS)
    rb, rh, ri = r // (H * S), (r // S) % H, r % S        # batch / head / query pos per row
    c = jnp.arange(BS)
    cb, cj = c // S, c % S                                 # batch / token pos per column
    sel_rq = ((rb[:, None] == cb[None, :])
              & (ri[:, None] == cj[None, :])).astype(jnp.float32)        # [BHS, BS]
    head_mask = (jnp.arange(D)[None, :] // HD == rh[:, None]).astype(jnp.float32)
    batch_bias = jnp.where(rb[:, None] == cb[None, :], 0.0, -1e30).astype(jnp.float32)
    c_att = jnp.concatenate([sel_rq, head_mask, batch_bias], axis=-1)    # [BHS, 64]
    c_qr = jnp.transpose(sel_rq)                                         # [BS, BHS]
    c_exp = (jnp.arange(E_TOT * FF)[None, :] // FF
             == jnp.arange(E_TOT)[:, None]).astype(jnp.float32)          # [E_TOT, 6*FF]

    return (w_d.astype(jnp.bfloat16), w_c.astype(jnp.bfloat16), b_p,
            c_att, c_qr, c_exp)


# --------------------------------- main -------------------------------------
if __name__ == "__main__":
    key = jax.random.PRNGKey(0)
    kx, kp = jax.random.split(key)
    x = jax.random.normal(kx, (B, S, D), jnp.float32)
    packed = init_packed_params(kp)

    y, router_loss, expert_assignments, attn_w = unified_modal_encoder(x, packed)
    jax.block_until_ready((y, router_loss, expert_assignments, attn_w))

    assert y.shape == (B, S, D)
    assert attn_w.shape == (B, S, S)
    assert expert_assignments[0].shape == (B, S, E_SH)
    assert expert_assignments[1].shape == (B, S, E_IM)
    assert router_loss.shape == ()
    assert bool(jnp.all(jnp.isfinite(y)))
    assert bool(jnp.isfinite(router_loss))
    # exactly TOP_K shared experts active per token (tie-broken top-2 gating)
    assert bool(jnp.all(jnp.sum(expert_assignments[0] > 0, axis=-1) == TOP_K))
    # attention rows sum to ~1 within each batch (cross-batch mask works)
    assert bool(jnp.all(jnp.abs(jnp.sum(attn_w, axis=-1) - 1.0) < 1e-2))
    print("KERNEL_OK")
</pallas_src>

<mosaic_0001>
module attributes {stable_mosaic.version = 11 : i64} {
  func.func @encoder_kernel(%arg0: i32, %arg1: memref<16x32xf32, #tpu.memory_space<vmem>>, %arg2: memref<32x1152xbf16, #tpu.memory_space<vmem>>, %arg3: memref<912x32xbf16, #tpu.memory_space<vmem>>, %arg4: memref<2x1152xf32, #tpu.memory_space<vmem>>, %arg5: memref<128x64xf32, #tpu.memory_space<vmem>>, %arg6: memref<16x128xf32, #tpu.memory_space<vmem>>, %arg7: memref<6x768xf32, #tpu.memory_space<vmem>>, %arg8: memref<16x128xf32, #tpu.memory_space<vmem>>) attributes {dimension_semantics = [#tpu.dimension_semantics<arbitrary>], iteration_bounds = array<i64: 1>, scalar_prefetch = 0 : i64, scratch_operands = 0 : i64, tpu.core_type = #tpu.core_type<tc>, window_params = [{pipeline_mode = #tpu.pipeline_mode<synchronous>, transform_indices = @transform_0, window_bounds = array<i64: 16, 32>}, {pipeline_mode = #tpu.pipeline_mode<synchronous>, transform_indices = @transform_1, window_bounds = array<i64: 32, 1152>}, {pipeline_mode = #tpu.pipeline_mode<synchronous>, transform_indices = @transform_2, window_bounds = array<i64: 912, 32>}, {pipeline_mode = #tpu.pipeline_mode<synchronous>, transform_indices = @transform_3, window_bounds = array<i64: 2, 1152>}, {pipeline_mode = #tpu.pipeline_mode<synchronous>, transform_indices = @transform_4, window_bounds = array<i64: 128, 64>}, {pipeline_mode = #tpu.pipeline_mode<synchronous>, transform_indices = @transform_5, window_bounds = array<i64: 16, 128>}, {pipeline_mode = #tpu.pipeline_mode<synchronous>, transform_indices = @transform_6, window_bounds = array<i64: 6, 768>}, {pipeline_mode = #tpu.pipeline_mode<synchronous>, transform_indices = @transform_7, window_bounds = array<i64: 16, 128>}]} {
    %c0 = arith.constant 0 : index
    %c0_0 = arith.constant 0 : index
    %0 = vector.load %arg1[%c0, %c0_0] : memref<16x32xf32, #tpu.memory_space<vmem>>, vector<16x32xf32>
    %c1 = arith.constant 1 : index
    %c128 = arith.constant 128 : index
    %1 = vector.load %arg4[%c1, %c128] : memref<2x1152xf32, #tpu.memory_space<vmem>>, vector<1x32xf32>
    %c1_1 = arith.constant 1 : index
    %c256 = arith.constant 256 : index
    %2 = vector.load %arg4[%c1_1, %c256] : memref<2x1152xf32, #tpu.memory_space<vmem>>, vector<1x32xf32>
    %c1_2 = arith.constant 1 : index
    %c384 = arith.constant 384 : index
    %3 = vector.load %arg4[%c1_2, %c384] : memref<2x1152xf32, #tpu.memory_space<vmem>>, vector<1x32xf32>
    %c1_3 = arith.constant 1 : index
    %c512 = arith.constant 512 : index
    %4 = vector.load %arg4[%c1_3, %c512] : memref<2x1152xf32, #tpu.memory_space<vmem>>, vector<1x32xf32>
    %c0_4 = arith.constant 0 : index
    %c0_5 = arith.constant 0 : index
    %5 = vector.load %arg5[%c0_4, %c0_5] : memref<128x64xf32, #tpu.memory_space<vmem>>, vector<128x16xf32>
    %c0_6 = arith.constant 0 : index
    %c16 = arith.constant 16 : index
    %6 = vector.load %arg5[%c0_6, %c16] : memref<128x64xf32, #tpu.memory_space<vmem>>, vector<128x32xf32>
    %c0_7 = arith.constant 0 : index
    %c48 = arith.constant 48 : index
    %7 = vector.load %arg5[%c0_7, %c48] : memref<128x64xf32, #tpu.memory_space<vmem>>, vector<128x16xf32>
    %c0_8 = arith.constant 0 : index
    %c0_9 = arith.constant 0 : index
    %8 = vector.load %arg6[%c0_8, %c0_9] : memref<16x128xf32, #tpu.memory_space<vmem>>, vector<16x128xf32>
    %c0_10 = arith.constant 0 : index
    %c0_11 = arith.constant 0 : index
    %9 = vector.load %arg7[%c0_10, %c0_11] : memref<6x768xf32, #tpu.memory_space<vmem>>, vector<6x768xf32>
    %cst = arith.constant dense<0.000000e+00> : vector<16xf32>
    %10 = vector.multi_reduction <add>, %0, %cst [1] : vector<16x32xf32> to vector<16xf32>
    %11 = vector.shape_cast %10 : vector<16xf32> to vector<16x1xf32>
    %cst_12 = arith.constant 3.200000e+01 : f32
    %12 = vector.broadcast %cst_12 : f32 to vector<16x1xf32>
    %13 = arith.divf %11, %12 : vector<16x1xf32>
    %14 = vector.broadcast %13 : vector<16x1xf32> to vector<16x32xf32>
    %15 = arith.subf %0, %14 : vector<16x32xf32>
    %16 = arith.mulf %15, %15 : vector<16x32xf32>
    %cst_13 = arith.constant dense<0.000000e+00> : vector<16xf32>
    %17 = vector.multi_reduction <add>, %16, %cst_13 [1] : vector<16x32xf32> to vector<16xf32>
    %18 = vector.shape_cast %17 : vector<16xf32> to vector<16x1xf32>
    %cst_14 = arith.constant 3.200000e+01 : f32
    %19 = vector.broadcast %cst_14 : f32 to vector<16x1xf32>
    %20 = arith.divf %18, %19 : vector<16x1xf32>
    %21 = vector.broadcast %13 : vector<16x1xf32> to vector<16x32xf32>
    %22 = arith.subf %0, %21 : vector<16x32xf32>
    %cst_15 = arith.constant 9.99999974E-6 : f32
    %23 = vector.broadcast %cst_15 : f32 to vector<16x1xf32>
    %24 = arith.addf %20, %23 : vector<16x1xf32>
    %25 = math.rsqrt %24 : vector<16x1xf32>
    %26 = vector.broadcast %25 : vector<16x1xf32> to vector<16x32xf32>
    %27 = arith.mulf %22, %26 : vector<16x32xf32>
    %28 = vector.broadcast %1 : vector<1x32xf32> to vector<16x32xf32>
    %29 = arith.mulf %27, %28 : vector<16x32xf32>
    %30 = vector.broadcast %2 : vector<1x32xf32> to vector<16x32xf32>
    %31 = arith.addf %29, %30 : vector<16x32xf32>
    %c0_16 = arith.constant 0 : index
    %c896 = arith.constant 896 : index
    %32 = vector.load %arg2[%c0_16, %c896] : memref<32x1152xbf16, #tpu.memory_space<vmem>>, vector<32x96xbf16>
    %33 = arith.truncf %31 : vector<16x32xf32> to vector<16x32xbf16>
    %cst_17 = arith.constant dense<0.000000e+00> : vector<16x96xf32>
    %34 = tpu.matmul %33, %32, %cst_17 {dimension_numbers = #tpu.dot_dimension_numbers<[1], [0], [0], [1], [0, 0, 1, 1], [], []>} : vector<16x32xbf16>, vector<32x96xbf16>, vector<16x96xf32> -> vector<16x96xf32>
    %c0_18 = arith.constant 0 : index
    %c896_19 = arith.constant 896 : index
    %35 = vector.load %arg4[%c0_18, %c896_19] : memref<2x1152xf32, #tpu.memory_space<vmem>>, vector<1x96xf32>
    %36 = vector.broadcast %35 : vector<1x96xf32> to vector<16x96xf32>
    %37 = arith.addf %34, %36 : vector<16x96xf32>
    %38 = vector.extract_strided_slice %37 {offsets = [0, 0], sizes = [16, 32], strides = [1, 1]} : vector<16x96xf32> to vector<16x32xf32>
    %39 = vector.extract_strided_slice %37 {offsets = [0, 32], sizes = [16, 32], strides = [1, 1]} : vector<16x96xf32> to vector<16x32xf32>
    %40 = vector.extract_strided_slice %37 {offsets = [0, 64], sizes = [16, 32], strides = [1, 1]} : vector<16x96xf32> to vector<16x32xf32>
    %cst_20 = arith.constant dense<0.000000e+00> : vector<128x32xf32>
    %41 = tpu.matmul %5, %38, %cst_20 {dimension_numbers = #tpu.dot_dimension_numbers<[1], [0], [0], [1], [0, 0, 1, 1], [], []>} : vector<128x16xf32>, vector<16x32xf32>, vector<128x32xf32> -> vector<128x32xf32>
    %42 = arith.mulf %41, %6 : vector<128x32xf32>
    %cst_21 = arith.constant dense<0.000000e+00> : vector<128x16xf32>
    %43 = tpu.matmul %42, %39, %cst_21 {dimension_numbers = #tpu.dot_dimension_numbers<[1], [1], [0], [0], [0, 0, 1, 0], [], []>} : vector<128x32xf32>, vector<16x32xf32>, vector<128x16xf32> -> vector<128x16xf32>
    %cst_22 = arith.constant 5.000000e-01 : f32
    %44 = vector.broadcast %cst_22 : f32 to vector<128x16xf32>
    %45 = arith.mulf %43, %44 : vector<128x16xf32>
    %46 = arith.addf %45, %7 : vector<128x16xf32>
    %cst_23 = arith.constant dense<0xFF800000> : vector<128xf32>
    %47 = vector.multi_reduction <maximumf>, %46, %cst_23 [1] : vector<128x16xf32> to vector<128xf32>
    %48 = vector.shape_cast %47 : vector<128xf32> to vector<128x1xf32>
    %49 = vector.broadcast %48 : vector<128x1xf32> to vector<128x16xf32>
    %50 = arith.subf %46, %49 : vector<128x16xf32>
    %51 = math.exp %50 : vector<128x16xf32>
    %cst_24 = arith.constant dense<0.000000e+00> : vector<128xf32>
    %52 = vector.multi_reduction <add>, %51, %cst_24 [1] : vector<128x16xf32> to vector<128xf32>
    %53 = vector.shape_cast %52 : vector<128xf32> to vector<128x1xf32>
    %54 = tpu.reciprocal %53 {approx = true} : vector<128x1xf32> -> vector<128x1xf32>
    %55 = vector.broadcast %54 : vector<128x1xf32> to vector<128x16xf32>
    %56 = arith.mulf %51, %55 : vector<128x16xf32>
    %cst_25 = arith.constant dense<0.000000e+00> : vector<128x32xf32>
    %57 = tpu.matmul %56, %40, %cst_25 {dimension_numbers = #tpu.dot_dimension_numbers<[1], [0], [0], [1], [0, 0, 1, 1], [], []>} : vector<128x16xf32>, vector<16x32xf32>, vector<128x32xf32> -> vector<128x32xf32>
    %58 = arith.mulf %57, %6 : vector<128x32xf32>
    %59 = tpu.concatenate %56, %58 in 1 : vector<128x16xf32>, vector<128x32xf32> -> vector<128x48xf32>
    %cst_26 = arith.constant dense<0.000000e+00> : vector<16x48xf32>
    %60 = tpu.matmul %8, %59, %cst_26 {dimension_numbers = #tpu.dot_dimension_numbers<[1], [0], [0], [1], [0, 0, 1, 1], [], []>} : vector<16x128xf32>, vector<128x48xf32>, vector<16x48xf32> -> vector<16x48xf32>
    %61 = vector.extract_strided_slice %60 {offsets = [0, 0], sizes = [16, 16], strides = [1, 1]} : vector<16x48xf32> to vector<16x16xf32>
    %cst_27 = arith.constant 1.250000e-01 : f32
    %62 = vector.broadcast %cst_27 : f32 to vector<16x16xf32>
    %63 = arith.mulf %61, %62 : vector<16x16xf32>
    %64 = vector.extract_strided_slice %60 {offsets = [0, 16], sizes = [16, 32], strides = [1, 1]} : vector<16x48xf32> to vector<16x32xf32>
    %c0_28 = arith.constant 0 : index
    %c1024 = arith.constant 1024 : index
    %65 = vector.load %arg2[%c0_28, %c1024] : memref<32x1152xbf16, #tpu.memory_space<vmem>>, vector<32x32xbf16>
    %66 = arith.truncf %64 : vector<16x32xf32> to vector<16x32xbf16>
    %cst_29 = arith.constant dense<0.000000e+00> : vector<16x32xf32>
    %67 = tpu.matmul %66, %65, %cst_29 {dimension_numbers = #tpu.dot_dimension_numbers<[1], [0], [0], [1], [0, 0, 1, 1], [], []>} : vector<16x32xbf16>, vector<32x32xbf16>, vector<16x32xf32> -> vector<16x32xf32>
    %c0_30 = arith.constant 0 : index
    %c1024_31 = arith.constant 1024 : index
    %68 = vector.load %arg4[%c0_30, %c1024_31] : memref<2x1152xf32, #tpu.memory_space<vmem>>, vector<1x32xf32>
    %69 = vector.broadcast %68 : vector<1x32xf32> to vector<16x32xf32>
    %70 = arith.addf %67, %69 : vector<16x32xf32>
    %71 = arith.addf %0, %70 : vector<16x32xf32>
    %cst_32 = arith.constant dense<0.000000e+00> : vector<16xf32>
    %72 = vector.multi_reduction <add>, %71, %cst_32 [1] : vector<16x32xf32> to vector<16xf32>
    %73 = vector.shape_cast %72 : vector<16xf32> to vector<16x1xf32>
    %cst_33 = arith.constant 3.200000e+01 : f32
    %74 = vector.broadcast %cst_33 : f32 to vector<16x1xf32>
    %75 = arith.divf %73, %74 : vector<16x1xf32>
    %76 = vector.broadcast %75 : vector<16x1xf32> to vector<16x32xf32>
    %77 = arith.subf %71, %76 : vector<16x32xf32>
    %78 = arith.mulf %77, %77 : vector<16x32xf32>
    %cst_34 = arith.constant dense<0.000000e+00> : vector<16xf32>
    %79 = vector.multi_reduction <add>, %78, %cst_34 [1] : vector<16x32xf32> to vector<16xf32>
    %80 = vector.shape_cast %79 : vector<16xf32> to vector<16x1xf32>
    %cst_35 = arith.constant 3.200000e+01 : f32
    %81 = vector.broadcast %cst_35 : f32 to vector<16x1xf32>
    %82 = arith.divf %80, %81 : vector<16x1xf32>
    %83 = vector.broadcast %75 : vector<16x1xf32> to vector<16x32xf32>
    %84 = arith.subf %71, %83 : vector<16x32xf32>
    %cst_36 = arith.constant 9.99999974E-6 : f32
    %85 = vector.broadcast %cst_36 : f32 to vector<16x1xf32>
    %86 = arith.addf %82, %85 : vector<16x1xf32>
    %87 = math.rsqrt %86 : vector<16x1xf32>
    %88 = vector.broadcast %87 : vector<16x1xf32> to vector<16x32xf32>
    %89 = arith.mulf %84, %88 : vector<16x32xf32>
    %90 = vector.broadcast %3 : vector<1x32xf32> to vector<16x32xf32>
    %91 = arith.mulf %89, %90 : vector<16x32xf32>
    %92 = vector.broadcast %4 : vector<1x32xf32> to vector<16x32xf32>
    %93 = arith.addf %91, %92 : vector<16x32xf32>
    %c0_37 = arith.constant 0 : index
    %c1056 = arith.constant 1056 : index
    %94 = vector.load %arg2[%c0_37, %c1056] : memref<32x1152xbf16, #tpu.memory_space<vmem>>, vector<32x6xbf16>
    %95 = arith.truncf %93 : vector<16x32xf32> to vector<16x32xbf16>
    %cst_38 = arith.constant dense<0.000000e+00> : vector<16x6xf32>
    %96 = tpu.matmul %95, %94, %cst_38 {dimension_numbers = #tpu.dot_dimension_numbers<[1], [0], [0], [1], [0, 0, 1, 1], [], []>} : vector<16x32xbf16>, vector<32x6xbf16>, vector<16x6xf32> -> vector<16x6xf32>
    %c0_39 = arith.constant 0 : index
    %c1056_40 = arith.constant 1056 : index
    %97 = vector.load %arg4[%c0_39, %c1056_40] : memref<2x1152xf32, #tpu.memory_space<vmem>>, vector<1x6xf32>
    %98 = vector.broadcast %97 : vector<1x6xf32> to vector<16x6xf32>
    %99 = arith.addf %96, %98 : vector<16x6xf32>
    %100 = vector.extract_strided_slice %99 {offsets = [0, 0], sizes = [16, 4], strides = [1, 1]} : vector<16x6xf32> to vector<16x4xf32>
    %cst_41 = arith.constant dense<0xFF800000> : vector<16xf32>
    %101 = vector.multi_reduction <maximumf>, %100, %cst_41 [1] : vector<16x4xf32> to vector<16xf32>
    %102 = vector.shape_cast %101 : vector<16xf32> to vector<16x1xf32>
    %103 = vector.broadcast %102 : vector<16x1xf32> to vector<16x4xf32>
    %104 = arith.subf %100, %103 : vector<16x4xf32>
    %105 = math.exp %104 : vector<16x4xf32>
    %cst_42 = arith.constant dense<0.000000e+00> : vector<16xf32>
    %106 = vector.multi_reduction <add>, %105, %cst_42 [1] : vector<16x4xf32> to vector<16xf32>
    %107 = vector.shape_cast %106 : vector<16xf32> to vector<16x1xf32>
    %108 = vector.broadcast %107 : vector<16x1xf32> to vector<16x4xf32>
    %109 = arith.divf %105, %108 : vector<16x4xf32>
    %110 = vector.extract_strided_slice %99 {offsets = [0, 4], sizes = [16, 2], strides = [1, 1]} : vector<16x6xf32> to vector<16x2xf32>
    %cst_43 = arith.constant dense<0xFF800000> : vector<16xf32>
    %111 = vector.multi_reduction <maximumf>, %110, %cst_43 [1] : vector<16x2xf32> to vector<16xf32>
    %112 = vector.shape_cast %111 : vector<16xf32> to vector<16x1xf32>
    %113 = vector.broadcast %112 : vector<16x1xf32> to vector<16x2xf32>
    %114 = arith.subf %110, %113 : vector<16x2xf32>
    %115 = math.exp %114 : vector<16x2xf32>
    %cst_44 = arith.constant dense<0.000000e+00> : vector<16xf32>
    %116 = vector.multi_reduction <add>, %115, %cst_44 [1] : vector<16x2xf32> to vector<16xf32>
    %117 = vector.shape_cast %116 : vector<16xf32> to vector<16x1xf32>
    %118 = vector.broadcast %117 : vector<16x1xf32> to vector<16x2xf32>
    %119 = arith.divf %115, %118 : vector<16x2xf32>
    %120 = tpu.iota {dimensions = array<i32: 1>} : vector<16x4xi32>
    %cst_45 = arith.constant dense<0xFF800000> : vector<16xf32>
    %121 = vector.multi_reduction <maximumf>, %109, %cst_45 [1] : vector<16x4xf32> to vector<16xf32>
    %122 = vector.shape_cast %121 : vector<16xf32> to vector<16x1xf32>
    %123 = vector.broadcast %122 : vector<16x1xf32> to vector<16x4xf32>
    %124 = arith.cmpf oeq, %109, %123 : vector<16x4xf32>
    %c4_i32 = arith.constant 4 : i32
    %125 = vector.broadcast %c4_i32 : i32 to vector<16x4xi32>
    %126 = arith.select %124, %120, %125 : vector<16x4xi1>, vector<16x4xi32>
    %cst_46 = arith.constant dense<2147483647> : vector<16xi32>
    %127 = vector.multi_reduction <minsi>, %126, %cst_46 [1] : vector<16x4xi32> to vector<16xi32>
    %128 = vector.shape_cast %127 : vector<16xi32> to vector<16x1xi32>
    %129 = vector.broadcast %128 : vector<16x1xi32> to vector<16x4xi32>
    %130 = arith.cmpi eq, %120, %129 : vector<16x4xi32>
    %cst_47 = arith.constant 0xFF800000 : f32
    %131 = vector.broadcast %cst_47 : f32 to vector<16x4xf32>
    %132 = arith.select %130, %131, %109 : vector<16x4xi1>, vector<16x4xf32>
    %cst_48 = arith.constant dense<0xFF800000> : vector<16xf32>
    %133 = vector.multi_reduction <maximumf>, %132, %cst_48 [1] : vector<16x4xf32> to vector<16xf32>
    %134 = vector.shape_cast %133 : vector<16xf32> to vector<16x1xf32>
    %135 = vector.broadcast %134 : vector<16x1xf32> to vector<16x4xf32>
    %136 = arith.cmpf oeq, %132, %135 : vector<16x4xf32>
    %c4_i32_49 = arith.constant 4 : i32
    %137 = vector.broadcast %c4_i32_49 : i32 to vector<16x4xi32>
    %138 = arith.select %136, %120, %137 : vector<16x4xi1>, vector<16x4xi32>
    %cst_50 = arith.constant dense<2147483647> : vector<16xi32>
    %139 = vector.multi_reduction <minsi>, %138, %cst_50 [1] : vector<16x4xi32> to vector<16xi32>
    %140 = vector.shape_cast %139 : vector<16xi32> to vector<16x1xi32>
    %141 = vector.broadcast %140 : vector<16x1xi32> to vector<16x4xi32>
    %142 = arith.cmpi eq, %120, %141 : vector<16x4xi32>
    %143 = arith.ori %130, %142 : vector<16x4xi1>
    %144 = arith.extui %143 : vector<16x4xi1> to vector<16x4xi32>
    %145 = arith.sitofp %144 : vector<16x4xi32> to vector<16x4xf32>
    %146 = arith.mulf %109, %145 : vector<16x4xf32>
    %147 = tpu.concatenate %146, %119 in 1 : vector<16x4xf32>, vector<16x2xf32> -> vector<16x6xf32>
    %c0_51 = arith.constant 0 : index
    %c0_52 = arith.constant 0 : index
    %148 = vector.load %arg2[%c0_51, %c0_52] : memref<32x1152xbf16, #tpu.memory_space<vmem>>, vector<32x768xbf16>
    %149 = arith.truncf %93 : vector<16x32xf32> to vector<16x32xbf16>
    %cst_53 = arith.constant dense<0.000000e+00> : vector<16x768xf32>
    %150 = tpu.matmul %149, %148, %cst_53 {dimension_numbers = #tpu.dot_dimension_numbers<[1], [0], [0], [1], [0, 0, 1, 1], [], []>} : vector<16x32xbf16>, vector<32x768xbf16>, vector<16x768xf32> -> vector<16x768xf32>
    %c0_54 = arith.constant 0 : index
    %c0_55 = arith.constant 0 : index
    %151 = vector.load %arg4[%c0_54, %c0_55] : memref<2x1152xf32, #tpu.memory_space<vmem>>, vector<1x768xf32>
    %152 = vector.broadcast %151 : vector<1x768xf32> to vector<16x768xf32>
    %153 = arith.addf %150, %152 : vector<16x768xf32>
    %154 = arith.mulf %153, %153 : vector<16x768xf32>
    %155 = arith.mulf %153, %154 : vector<16x768xf32>
    %cst_56 = arith.constant 4.471500e-02 : f32
    %156 = vector.broadcast %cst_56 : f32 to vector<16x768xf32>
    %157 = arith.mulf %156, %155 : vector<16x768xf32>
    %158 = arith.addf %153, %157 : vector<16x768xf32>
    %cst_57 = arith.constant 0.797884583 : f32
    %159 = vector.broadcast %cst_57 : f32 to vector<16x768xf32>
    %160 = arith.mulf %159, %158 : vector<16x768xf32>
    %161 = math.tanh %160 : vector<16x768xf32>
    %cst_58 = arith.constant 1.000000e+00 : f32
    %162 = vector.broadcast %cst_58 : f32 to vector<16x768xf32>
    %163 = arith.addf %162, %161 : vector<16x768xf32>
    %cst_59 = arith.constant 5.000000e-01 : f32
    %164 = vector.broadcast %cst_59 : f32 to vector<16x768xf32>
    %165 = arith.mulf %164, %163 : vector<16x768xf32>
    %166 = arith.mulf %153, %165 : vector<16x768xf32>
    %cst_60 = arith.constant dense<0.000000e+00> : vector<16x768xf32>
    %167 = tpu.matmul %147, %9, %cst_60 {dimension_numbers = #tpu.dot_dimension_numbers<[1], [0], [0], [1], [0, 0, 1, 1], [], []>} : vector<16x6xf32>, vector<6x768xf32>, vector<16x768xf32> -> vector<16x768xf32>
    %cst_61 = arith.constant 0.000000e+00 : f32
    %168 = vector.broadcast %cst_61 : f32 to vector<16x10xf32>
    %169 = arith.mulf %166, %167 : vector<16x768xf32>
    %170 = tpu.concatenate %169, %147, %168 in 1 : vector<16x768xf32>, vector<16x6xf32>, vector<16x10xf32> -> vector<16x784xf32>
    %c0_62 = arith.constant 0 : index
    %c0_63 = arith.constant 0 : index
    %171 = vector.load %arg3[%c0_62, %c0_63] : memref<912x32xbf16, #tpu.memory_space<vmem>>, vector<784x32xbf16>
    %172 = arith.truncf %170 : vector<16x784xf32> to vector<16x784xbf16>
    %cst_64 = arith.constant dense<0.000000e+00> : vector<16x32xf32>
    %173 = tpu.matmul %172, %171, %cst_64 {dimension_numbers = #tpu.dot_dimension_numbers<[1], [0], [0], [1], [0, 0, 1, 1], [], []>} : vector<16x784xbf16>, vector<784x32xbf16>, vector<16x32xf32> -> vector<16x32xf32>
    %174 = arith.addf %71, %173 : vector<16x32xf32>
    %cst_65 = arith.constant dense<0.000000e+00> : vector<16xf32>
    %175 = vector.multi_reduction <add>, %174, %cst_65 [1] : vector<16x32xf32> to vector<16xf32>
    %176 = vector.shape_cast %175 : vector<16xf32> to vector<16x1xf32>
    %cst_66 = arith.constant 3.200000e+01 : f32
    %177 = vector.broadcast %cst_66 : f32 to vector<16x1xf32>
    %178 = arith.divf %176, %177 : vector<16x1xf32>
    %179 = vector.broadcast %178 : vector<16x1xf32> to vector<16x32xf32>
    %180 = arith.subf %174, %179 : vector<16x32xf32>
    %181 = arith.mulf %180, %180 : vector<16x32xf32>
    %cst_67 = arith.constant dense<0.000000e+00> : vector<16xf32>
    %182 = vector.multi_reduction <add>, %181, %cst_67 [1] : vector<16x32xf32> to vector<16xf32>
    %183 = vector.shape_cast %182 : vector<16xf32> to vector<16x1xf32>
    %cst_68 = arith.constant 3.200000e+01 : f32
    %184 = vector.broadcast %cst_68 : f32 to vector<16x1xf32>
    %185 = arith.divf %183, %184 : vector<16x1xf32>
    %186 = vector.broadcast %178 : vector<16x1xf32> to vector<16x32xf32>
    %187 = arith.subf %174, %186 : vector<16x32xf32>
    %cst_69 = arith.constant 9.99999974E-6 : f32
    %188 = vector.broadcast %cst_69 : f32 to vector<16x1xf32>
    %189 = arith.addf %185, %188 : vector<16x1xf32>
    %190 = math.rsqrt %189 : vector<16x1xf32>
    %191 = vector.broadcast %190 : vector<16x1xf32> to vector<16x32xf32>
    %192 = arith.mulf %187, %191 : vector<16x32xf32>
    %193 = vector.broadcast %3 : vector<1x32xf32> to vector<16x32xf32>
    %194 = arith.mulf %192, %193 : vector<16x32xf32>
    %195 = vector.broadcast %4 : vector<1x32xf32> to vector<16x32xf32>
    %196 = arith.addf %194, %195 : vector<16x32xf32>
    %c0_70 = arith.constant 0 : index
    %c768 = arith.constant 768 : index
    %197 = vector.load %arg2[%c0_70, %c768] : memref<32x1152xbf16, #tpu.memory_space<vmem>>, vector<32x128xbf16>
    %198 = arith.truncf %196 : vector<16x32xf32> to vector<16x32xbf16>
    %cst_71 = arith.constant dense<0.000000e+00> : vector<16x128xf32>
    %199 = tpu.matmul %198, %197, %cst_71 {dimension_numbers = #tpu.dot_dimension_numbers<[1], [0], [0], [1], [0, 0, 1, 1], [], []>} : vector<16x32xbf16>, vector<32x128xbf16>, vector<16x128xf32> -> vector<16x128xf32>
    %c0_72 = arith.constant 0 : index
    %c768_73 = arith.constant 768 : index
    %200 = vector.load %arg4[%c0_72, %c768_73] : memref<2x1152xf32, #tpu.memory_space<vmem>>, vector<1x128xf32>
    %201 = vector.broadcast %200 : vector<1x128xf32> to vector<16x128xf32>
    %202 = arith.addf %199, %201 : vector<16x128xf32>
    %203 = arith.mulf %202, %202 : vector<16x128xf32>
    %204 = arith.mulf %202, %203 : vector<16x128xf32>
    %cst_74 = arith.constant 4.471500e-02 : f32
    %205 = vector.broadcast %cst_74 : f32 to vector<16x128xf32>
    %206 = arith.mulf %205, %204 : vector<16x128xf32>
    %207 = arith.addf %202, %206 : vector<16x128xf32>
    %cst_75 = arith.constant 0.797884583 : f32
    %208 = vector.broadcast %cst_75 : f32 to vector<16x128xf32>
    %209 = arith.mulf %208, %207 : vector<16x128xf32>
    %210 = math.tanh %209 : vector<16x128xf32>
    %cst_76 = arith.constant 1.000000e+00 : f32
    %211 = vector.broadcast %cst_76 : f32 to vector<16x128xf32>
    %212 = arith.addf %211, %210 : vector<16x128xf32>
    %cst_77 = arith.constant 5.000000e-01 : f32
    %213 = vector.broadcast %cst_77 : f32 to vector<16x128xf32>
    %214 = arith.mulf %213, %212 : vector<16x128xf32>
    %215 = arith.mulf %202, %214 : vector<16x128xf32>
    %c784 = arith.constant 784 : index
    %c0_78 = arith.constant 0 : index
    %216 = vector.load %arg3[%c784, %c0_78] : memref<912x32xbf16, #tpu.memory_space<vmem>>, vector<128x32xbf16>
    %217 = arith.truncf %215 : vector<16x128xf32> to vector<16x128xbf16>
    %cst_79 = arith.constant dense<0.000000e+00> : vector<16x32xf32>
    %218 = tpu.matmul %217, %216, %cst_79 {dimension_numbers = #tpu.dot_dimension_numbers<[1], [0], [0], [1], [0, 0, 1, 1], [], []>} : vector<16x128xbf16>, vector<128x32xbf16>, vector<16x32xf32> -> vector<16x32xf32>
    %c1_80 = arith.constant 1 : index
    %c0_81 = arith.constant 0 : index
    %219 = vector.load %arg4[%c1_80, %c0_81] : memref<2x1152xf32, #tpu.memory_space<vmem>>, vector<1x32xf32>
    %220 = vector.broadcast %219 : vector<1x32xf32> to vector<16x32xf32>
    %221 = arith.addf %218, %220 : vector<16x32xf32>
    %222 = arith.addf %174, %221 : vector<16x32xf32>
    %cst_82 = arith.constant 0.000000e+00 : f32
    %223 = vector.broadcast %cst_82 : f32 to vector<16x68xf32>
    %224 = tpu.concatenate %222, %63, %146, %119, %109, %119, %223 in 1 : vector<16x32xf32>, vector<16x16xf32>, vector<16x4xf32>, vector<16x2xf32>, vector<16x4xf32>, vector<16x2xf32>, vector<16x68xf32> -> vector<16x128xf32>
    %c0_83 = arith.constant 0 : index
    %c0_84 = arith.constant 0 : index
    %225 = vector.load %arg8[%c0_83, %c0_84] : memref<16x128xf32, #tpu.memory_space<vmem>>, vector<16x128xf32>
    tpu.vector_store %arg8[%c0_83, %c0_84], %224 {strides = array<i32>} : memref<16x128xf32, #tpu.memory_space<vmem>>, vector<16x128xf32>,
    return
  }
  func.func @transform_0(%arg0: i32) -> (i32, i32) {
    %c0_i32 = arith.constant 0 : i32
    %c0_i32_0 = arith.constant 0 : i32
    %c0_i32_1 = arith.constant 0 : i32
    return %c0_i32, %c0_i32_0 : i32, i32
  }
  func.func @transform_1(%arg0: i32) -> (i32, i32) {
    %c0_i32 = arith.constant 0 : i32
    %c0_i32_0 = arith.constant 0 : i32
    %c0_i32_1 = arith.constant 0 : i32
    return %c0_i32, %c0_i32_0 : i32, i32
  }
  func.func @transform_2(%arg0: i32) -> (i32, i32) {
    %c0_i32 = arith.constant 0 : i32
    %c0_i32_0 = arith.constant 0 : i32
    %c0_i32_1 = arith.constant 0 : i32
    return %c0_i32, %c0_i32_0 : i32, i32
  }
  func.func @transform_3(%arg0: i32) -> (i32, i32) {
    %c0_i32 = arith.constant 0 : i32
    %c0_i32_0 = arith.constant 0 : i32
    %c0_i32_1 = arith.constant 0 : i32
    return %c0_i32, %c0_i32_0 : i32, i32
  }
  func.func @transform_4(%arg0: i32) -> (i32, i32) {
    %c0_i32 = arith.constant 0 : i32
    %c0_i32_0 = arith.constant 0 : i32
    %c0_i32_1 = arith.constant 0 : i32
    return %c0_i32, %c0_i32_0 : i32, i32
  }
  func.func @transform_5(%arg0: i32) -> (i32, i32) {
    %c0_i32 = arith.constant 0 : i32
    %c0_i32_0 = arith.constant 0 : i32
    %c0_i32_1 = arith.constant 0 : i32
    return %c0_i32, %c0_i32_0 : i32, i32
  }
  func.func @transform_6(%arg0: i32) -> (i32, i32) {
    %c0_i32 = arith.constant 0 : i32
    %c0_i32_0 = arith.constant 0 : i32
    %c0_i32_1 = arith.constant 0 : i32
    return %c0_i32, %c0_i32_0 : i32, i32
  }
  func.func @transform_7(%arg0: i32) -> (i32, i32) {
    %c0_i32 = arith.constant 0 : i32
    %c0_i32_0 = arith.constant 0 : i32
    %c0_i32_1 = arith.constant 0 : i32
    return %c0_i32, %c0_i32_0 : i32, i32
  }
}

</mosaic_0001>

<llo_original>
// kernel: tpu_custom_call.1
$region0: #{tpu_custom_call.1}
  #allocation0 [shape = 'u32[]', space=smem, size = 0x4, offset = 0x4, fixed_abs, tag = 'smem constant byte address 0x4 - core index']
  #allocation1 [shape = 'u32[72,128]{1,0:T(1,128)}', space=vmem, size = 0x9000, scoped, tag = 'internal scratch']
  %s0 = inlined_call_operand.vmem [shape: f32[16,32], index: 0, kind: input, shape index: {}]
  %s1 = inlined_call_operand.vmem [shape: bf16[32,1152], index: 1, kind: input, shape index: {}]
  %s2 = inlined_call_operand.vmem [shape: bf16[912,32], index: 2, kind: input, shape index: {}]
  %s3 = inlined_call_operand.vmem [shape: f32[2,1152], index: 3, kind: input, shape index: {}]
  %s4 = inlined_call_operand.vmem [shape: f32[128,64], index: 4, kind: input, shape index: {}]
  %s5 = inlined_call_operand.vmem [shape: f32[16,128], index: 5, kind: input, shape index: {}]
  %s6 = inlined_call_operand.vmem [shape: f32[6,768], index: 6, kind: input, shape index: {}]
  %s7 = inlined_call_operand.hbm [shape: f32[16,128], index: 7, kind: output, shape index: {}]
  %s8 = sld [smem:[#allocation0]]
  $region38: #{tpu_custom_call.1} parent=0
    _
  %s10 = ssub.s32 1, %s8
  %s11 = scalar_select 0, %s10, %s8
  $region1: #{tpu_custom_call.1} parent=0
    #allocation2 [shape = 'u8[8192]{0}', space=vmem, size = 0x2000, scoped, tag = 'output window, operand 0, single buffered']
    #allocation3 [shape = 's32[1]{0}', space=sflag, size = 0x4, scoped, tag = 'scoped memory for tpu_custom_call.1']
    %12 = vsyncpa [#allocation3], 0
    // Predicated region
    $region2: #{tpu_custom_call.1} parent=1 // pred_check
      _
    $region3: #{tpu_custom_call.1} parent=1 // pred_check_branch
      %14 = sbr.rel (0) target = $region5
    $region4: #{tpu_custom_call.1} parent=1 // pred_region
      _
    $region5: #{tpu_custom_call.1} parent=1 // pred_fallthru
      _
    // Predicated region
    $region6: #{tpu_custom_call.1} parent=1 // pred_check
      _
    $region7: #{tpu_custom_call.1} parent=1 // pred_check_branch
      %16 = sbr.rel (0) target = $region9
    $region8: #{tpu_custom_call.1} parent=1 // pred_region
      _
    $region9: #{tpu_custom_call.1} parent=1 // pred_fallthru
      _
    // Predicated region
    $region10: #{tpu_custom_call.1} parent=1 // pred_check
      _
    $region11: #{tpu_custom_call.1} parent=1 // pred_check_branch
      %18 = sbr.rel (0) target = $region13
    $region12: #{tpu_custom_call.1} parent=1 // pred_region
      _
    $region13: #{tpu_custom_call.1} parent=1 // pred_fallthru
      _
    // Predicated region
    $region14: #{tpu_custom_call.1} parent=1 // pred_check
      _
    $region15: #{tpu_custom_call.1} parent=1 // pred_check_branch
      %20 = sbr.rel (0) target = $region17
    $region16: #{tpu_custom_call.1} parent=1 // pred_region
      _
    $region17: #{tpu_custom_call.1} parent=1 // pred_fallthru
      _
    // Predicated region
    $region18: #{tpu_custom_call.1} parent=1 // pred_check
      _
    $region19: #{tpu_custom_call.1} parent=1 // pred_check_branch
      %22 = sbr.rel (0) target = $region21
    $region20: #{tpu_custom_call.1} parent=1 // pred_region
      _
    $region21: #{tpu_custom_call.1} parent=1 // pred_fallthru
      _
    // Predicated region
    $region22: #{tpu_custom_call.1} parent=1 // pred_check
      _
    $region23: #{tpu_custom_call.1} parent=1 // pred_check_branch
      %24 = sbr.rel (0) target = $region25
    $region24: #{tpu_custom_call.1} parent=1 // pred_region
      _
    $region25: #{tpu_custom_call.1} parent=1 // pred_fallthru
      _
    // Predicated region
    $region26: #{tpu_custom_call.1} parent=1 // pred_check
      _
    $region27: #{tpu_custom_call.1} parent=1 // pred_check_branch
      %26 = sbr.rel (0) target = $region29
    $region28: #{tpu_custom_call.1} parent=1 // pred_region
      _
    $region29: #{tpu_custom_call.1} parent=1 // pred_fallthru
      _
    %v28 = vld [vmem:[%s0] sm:$0xff]
    %v29 = vld [vmem:[%s0 + $0x8] sm:$0xff]
    %v30 = vld [vmem:[%s3 + $0x3] sm:$0x1]
    %v31 = vld [vmem:[%s3 + $0x5] sm:$0x1]
    %v32 = vld [vmem:[%s3 + $0x7] sm:$0x1]
    %v33 = vld [vmem:[%s3 + $0x9] sm:$0x1]
    %v34 = vld [vmem:[%s4] sm:$0xff]
    %v35 = vld [vmem:[%s4 + $0x8] sm:$0xff]
    %v36 = vld [vmem:[%s4 + $0x10] sm:$0xff]
    %v37 = vld [vmem:[%s4 + $0x18] sm:$0xff]
    %v38 = vld [vmem:[%s4 + $0x20] sm:$0xff]
    %v39 = vld [vmem:[%s4 + $0x28] sm:$0xff]
    %v40 = vld [vmem:[%s4 + $0x30] sm:$0xff]
    %v41 = vld [vmem:[%s4 + $0x38] sm:$0xff]
    %v42 = vld [vmem:[%s4 + $0x40] sm:$0xff]
    %v43 = vld [vmem:[%s4 + $0x48] sm:$0xff]
    %v44 = vld [vmem:[%s4 + $0x50] sm:$0xff]
    %v45 = vld [vmem:[%s4 + $0x58] sm:$0xff]
    %v46 = vld [vmem:[%s4 + $0x60] sm:$0xff]
    %v47 = vld [vmem:[%s4 + $0x68] sm:$0xff]
    %v48 = vld [vmem:[%s4 + $0x70] sm:$0xff]
    %v49 = vld [vmem:[%s4 + $0x78] sm:$0xff]
    %v50 = vld [vmem:[%s5] sm:$0xff]
    %v51 = vld [vmem:[%s5 + $0x8] sm:$0xff]
    %v52 = vld [vmem:[%s6] sm:$0x3f]
    %v53 = vld [vmem:[%s6 + $0x8] sm:$0x3f]
    %v54 = vld [vmem:[%s6 + $0x10] sm:$0x3f]
    %v55 = vld [vmem:[%s6 + $0x18] sm:$0x3f]
    %v56 = vld [vmem:[%s6 + $0x20] sm:$0x3f]
    %v57 = vld [vmem:[%s6 + $0x28] sm:$0x3f]
    %vm58 = vcmask 261120
    %v59 = vsel %vm58, %v28, 0.0
    %60 = vadd.xlane.f32.xlu0 %v59
    %v61 = vpop.xlane.xlu0 %60
    %v62 = vsel %vm58, %v29, 0.0
    %63 = vadd.xlane.f32.xlu0 %v62
    %v64 = vpop.xlane.xlu0 %63
    %v65 = vrcp.pop 32.0
    %v66 = vmul.f32 32.0, %v65
    %v67 = vsub.f32 1.0, %v66
    %v68 = vmul.f32 %v65, %v67
    %v69 = vadd.f32 %v65, %v68
    %vm70 = vweird.f32 %v65
    %v71 = vsel %vm70, %v65, %v69
    %v72 = vmul.f32 %v61, %v71
    %v73 = vmul.f32 %v64, %v71
    %v74 = vsub.f32 %v28, %v72
    %v75 = vsub.f32 %v29, %v73
    %v76 = vmul.f32 %v74, %v74
    %v77 = vmul.f32 %v75, %v75
    %v78 = vsel %vm58, %v76, 0.0
    %79 = vadd.xlane.f32.xlu0 %v78
    %v80 = vpop.xlane.xlu0 %79
    %v81 = vsel %vm58, %v77, 0.0
    %82 = vadd.xlane.f32.xlu0 %v81
    %v83 = vpop.xlane.xlu0 %82
    %v84 = vmul.f32 %v80, %v71
    %v85 = vmul.f32 %v83, %v71
    %v86 = vadd.f32 %v84, 1e-05
    %v87 = vadd.f32 %v85, 1e-05
    %v88 = vrsqrt.pop %v86
    %v89 = vmul.f32 %v88, %v86
    %v90 = vmul.f32 %v89, %v88
    %v91 = vmul.f32 0.5, %v90
    %v92 = vsub.f32 1.5, %v91
    %v93 = vmul.f32 %v88, %v92
    %vm94 = vweird.f32 %v86
    %vm95 = vweird.f32 %v88
    %vm96 = vmor %vm94, %vm95
    %v97 = vsel %vm96, %v88, %v93
    %v98 = vrsqrt.pop %v87
    %v99 = vmul.f32 %v98, %v87
    %v100 = vmul.f32 %v99, %v98
    %v101 = vmul.f32 0.5, %v100
    %v102 = vsub.f32 1.5, %v101
    %v103 = vmul.f32 %v98, %v102
    %vm104 = vweird.f32 %v87
    %vm105 = vweird.f32 %v98
    %vm106 = vmor %vm104, %vm105
    %v107 = vsel %vm106, %v98, %v103
    %v108 = vmul.f32 %v74, %v97
    %v109 = vmul.f32 %v75, %v107
    %v110 = vperm.slane %v30, 0
    %v111 = vmul.f32 %v108, %v110
    %v112 = vmul.f32 %v109, %v110
    %v113 = vperm.slane %v31, 0
    %v114 = vadd.f32 %v111, %v113
    %v115 = vadd.f32 %v112, %v113
    %v116 = vld [vmem:[%s1 + $0x1c] sm:$0xf]
    %v117 = vld [vmem:[%s1 + $0x40] sm:$0xf]
    %v118 = vld [vmem:[%s1 + $0x64] sm:$0xf]
    %v119 = vld [vmem:[%s1 + $0x88] sm:$0xf]
    %v120 = vpack.c.bf16 %v115, %v114
    %v121 = vld [vmem:[%s3 + $0xe] sm:$0x1]
    %v122 = vperm.slane %v121, 0
    %v127 = vunpack.c.l.b16 %v116
    %v128 = vunpack.c.l.b16 %v117
    %v129 = vunpack.c.l.b16 %v118
    %v130 = vunpack.c.l.b16 %v119
    %v131 = vpack.c.b16 %v128, %v127
    %v132 = vpack.c.b16 %v130, %v129
    %v136 = vsel %vm58, %v120, 0
    %138 = vmatpush.bf16.msra.mxu0 0
    %139 = vmatpush.bf16.msra.mxu0 0
    %140 = vmatpush.bf16.msra.mxu0 0
    %141 = vmatpush.bf16.msra.mxu0 0
    %142 = vmatpush.bf16.msra.mxu0 0
    %143 = vmatpush.bf16.msra.mxu0 0
    %144 = vmatpush.bf16.msra.mxu0 %v132
    %145 = vmatpush.bf16.msra.mxu0 %v131
    %146 = vmatmul.bf16.gmra.mxu0 %v136
    %v147 = vpop.f32.mrf.mxu0
    %v148 = vadd.f32 %v122, %v147
    %v149 = vpop.f32.mrf.mxu0
    %v150 = vadd.f32 %v122, %v149
    %151 = vdwg.mxu0
    %vm152 = vcmask 130048
    %v154 = vsel %vm152, %v34, 0
    %v157 = vsel %vm152, %v35, 0
    %v160 = vsel %vm152, %v36, 0
    %v163 = vsel %vm152, %v37, 0
    %v166 = vsel %vm152, %v38, 0
    %v169 = vsel %vm152, %v39, 0
    %v172 = vsel %vm152, %v40, 0
    %v175 = vsel %vm152, %v41, 0
    %v178 = vsel %vm152, %v42, 0
    %v181 = vsel %vm152, %v43, 0
    %v184 = vsel %vm152, %v44, 0
    %v187 = vsel %vm152, %v45, 0
    %v190 = vsel %vm152, %v46, 0
    %v193 = vsel %vm152, %v47, 0
    %v196 = vsel %vm152, %v48, 0
    %v199 = vsel %vm152, %v49, 0
    %201 = vmatpush.msra.mxu0 0.0
    %202 = vmatpush.msra.mxu0 0.0
    %203 = vmatpush.msra.mxu0 0.0
    %204 = vmatpush.msra.mxu0 0.0
    %205 = vmatpush.msra.mxu0 0.0
    %206 = vmatpush.msra.mxu0 0.0
    %207 = vmatpush.msra.mxu0 0.0
    %208 = vmatpush.msra.mxu0 0.0
    %209 = vmatpush.msra.mxu0 0.0
    %210 = vmatpush.msra.mxu0 0.0
    %211 = vmatpush.msra.mxu0 0.0
    %212 = vmatpush.msra.mxu0 0.0
    %213 = vmatpush.msra.mxu0 0.0
    %214 = vmatpush.msra.mxu0 0.0
    %215 = vmatpush.msra.mxu0 %v150
    %216 = vmatpush.msra.mxu0 %v148
    %217 = vmatmul.f32.gmra.mxu0 %v154
    %v218 = vpop.f32.mrf.mxu0
    %v219 = vadd.f32 0.0, %v218
    %220 = vmatmul.f32.gmra.mxu0 %v157
    %v221 = vpop.f32.mrf.mxu0
    %v222 = vadd.f32 0.0, %v221
    %223 = vmatmul.f32.gmra.mxu0 %v160
    %v224 = vpop.f32.mrf.mxu0
    %v225 = vadd.f32 0.0, %v224
    %226 = vmatmul.f32.gmra.mxu0 %v163
    %v227 = vpop.f32.mrf.mxu0
    %v228 = vadd.f32 0.0, %v227
    %229 = vmatmul.f32.gmra.mxu0 %v166
    %v230 = vpop.f32.mrf.mxu0
    %v231 = vadd.f32 0.0, %v230
    %232 = vmatmul.f32.gmra.mxu0 %v169
    %v233 = vpop.f32.mrf.mxu0
    %v234 = vadd.f32 0.0, %v233
    %235 = vmatmul.f32.gmra.mxu0 %v172
    %v236 = vpop.f32.mrf.mxu0
    %v237 = vadd.f32 0.0, %v236
    %238 = vmatmul.f32.gmra.mxu0 %v175
    %v239 = vpop.f32.mrf.mxu0
    %v240 = vadd.f32 0.0, %v239
    %241 = vmatmul.f32.gmra.mxu0 %v178
    %v242 = vpop.f32.mrf.mxu0
    %v243 = vadd.f32 0.0, %v242
    %244 = vmatmul.f32.gmra.mxu0 %v181
    %v245 = vpop.f32.mrf.mxu0
    %v246 = vadd.f32 0.0, %v245
    %247 = vmatmul.f32.gmra.mxu0 %v184
    %v248 = vpop.f32.mrf.mxu0
    %v249 = vadd.f32 0.0, %v248
    %250 = vmatmul.f32.gmra.mxu0 %v187
    %v251 = vpop.f32.mrf.mxu0
    %v252 = vadd.f32 0.0, %v251
    %253 = vmatmul.f32.gmra.mxu0 %v190
    %v254 = vpop.f32.mrf.mxu0
    %v255 = vadd.f32 0.0, %v254
    %256 = vmatmul.f32.gmra.mxu0 %v193
    %v257 = vpop.f32.mrf.mxu0
    %v258 = vadd.f32 0.0, %v257
    %259 = vmatmul.f32.gmra.mxu0 %v196
    %v260 = vpop.f32.mrf.mxu0
    %v261 = vadd.f32 0.0, %v260
    %262 = vmatmul.f32.gmra.mxu0 %v199
    %v263 = vpop.f32.mrf.mxu0
    %v264 = vadd.f32 0.0, %v263
    %265 = vdwg.mxu0
    %266 = vrot.lane.b32.xlu0 %v34, 112
    %v267 = vpop.permute.xlu0 %266
    %268 = vrot.lane.b32.xlu0 %v35, 112
    %v269 = vpop.permute.xlu0 %268
    %270 = vrot.lane.b32.xlu0 %v36, 112
    %v271 = vpop.permute.xlu0 %270
    %272 = vrot.lane.b32.xlu0 %v37, 112
    %v273 = vpop.permute.xlu0 %272
    %274 = vrot.lane.b32.xlu0 %v38, 112
    %v275 = vpop.permute.xlu0 %274
    %276 = vrot.lane.b32.xlu0 %v39, 112
    %v277 = vpop.permute.xlu0 %276
    %278 = vrot.lane.b32.xlu0 %v40, 112
    %v279 = vpop.permute.xlu0 %278
    %280 = vrot.lane.b32.xlu0 %v41, 112
    %v281 = vpop.permute.xlu0 %280
    %282 = vrot.lane.b32.xlu0 %v42, 112
    %v283 = vpop.permute.xlu0 %282
    %284 = vrot.lane.b32.xlu0 %v43, 112
    %v285 = vpop.permute.xlu0 %284
    %286 = vrot.lane.b32.xlu0 %v44, 112
    %v287 = vpop.permute.xlu0 %286
    %288 = vrot.lane.b32.xlu0 %v45, 112
    %v289 = vpop.permute.xlu0 %288
    %290 = vrot.lane.b32.xlu0 %v46, 112
    %v291 = vpop.permute.xlu0 %290
    %292 = vrot.lane.b32.xlu0 %v47, 112
    %v293 = vpop.permute.xlu0 %292
    %294 = vrot.lane.b32.xlu0 %v48, 112
    %v295 = vpop.permute.xlu0 %294
    %296 = vrot.lane.b32.xlu0 %v49, 112
    %v297 = vpop.permute.xlu0 %296
    %v314 = vmul.f32 %v219, %v267
    %v315 = vmul.f32 %v222, %v269
    %v316 = vmul.f32 %v225, %v271
    %v317 = vmul.f32 %v228, %v273
    %v318 = vmul.f32 %v231, %v275
    %v319 = vmul.f32 %v234, %v277
    %v320 = vmul.f32 %v237, %v279
    %v321 = vmul.f32 %v240, %v281
    %v322 = vmul.f32 %v243, %v283
    %v323 = vmul.f32 %v246, %v285
    %v324 = vmul.f32 %v249, %v287
    %v325 = vmul.f32 %v252, %v289
    %v326 = vmul.f32 %v255, %v291
    %v327 = vmul.f32 %v258, %v293
    %v328 = vmul.f32 %v261, %v295
    %v329 = vmul.f32 %v264, %v297
    %332 = vrot.lane.b32.xlu0 %v148, 96
    %v333 = vpop.permute.xlu0 %332
    %334 = vrot.lane.b32.xlu0 %v150, 96
    %v335 = vpop.permute.xlu0 %334
    %v337 = vsel %vm58, %v314, 0
    %v340 = vsel %vm58, %v315, 0
    %v343 = vsel %vm58, %v316, 0
    %v346 = vsel %vm58, %v317, 0
    %v349 = vsel %vm58, %v318, 0
    %v352 = vsel %vm58, %v319, 0
    %v355 = vsel %vm58, %v320, 0
    %v358 = vsel %vm58, %v321, 0
    %v361 = vsel %vm58, %v322, 0
    %v364 = vsel %vm58, %v323, 0
    %v367 = vsel %vm58, %v324, 0
    %v370 = vsel %vm58, %v325, 0
    %v373 = vsel %vm58, %v326, 0
    %v376 = vsel %vm58, %v327, 0
    %v379 = vsel %vm58, %v328, 0
    %v382 = vsel %vm58, %v329, 0
    %v384 = vsel %vm58, %v333, 0
    %v386 = vsel %vm58, %v335, 0
    %388 = vmatpush.xpose.msra.mxu0 0.0
    %389 = vmatpush.xpose.msra.mxu0 0.0
    %390 = vmatpush.xpose.msra.mxu0 0.0
    %391 = vmatpush.xpose.msra.mxu0 0.0
    %392 = vmatpush.xpose.msra.mxu0 0.0
    %393 = vmatpush.xpose.msra.mxu0 0.0
    %394 = vmatpush.xpose.msra.mxu0 0.0
    %395 = vmatpush.xpose.msra.mxu0 0.0
    %396 = vmatpush.xpose.msra.mxu0 0.0
    %397 = vmatpush.xpose.msra.mxu0 0.0
    %398 = vmatpush.xpose.msra.mxu0 0.0
    %399 = vmatpush.xpose.msra.mxu0 0.0
    %400 = vmatpush.xpose.msra.mxu0 0.0
    %401 = vmatpush.xpose.msra.mxu0 0.0
    %402 = vmatpush.xpose.msra.mxu0 %v386
    %403 = vmatpush.xpose.msra.mxu0 %v384
    %404 = vmatmul.f32.gmra.mxu0 %v337
    %v405 = vpop.f32.mrf.mxu0
    %v406 = vadd.f32 0.0, %v405
    %407 = vmatmul.f32.gmra.mxu0 %v340
    %v408 = vpop.f32.mrf.mxu0
    %v409 = vadd.f32 0.0, %v408
    %410 = vmatmul.f32.gmra.mxu0 %v343
    %v411 = vpop.f32.mrf.mxu0
    %v412 = vadd.f32 0.0, %v411
    %413 = vmatmul.f32.gmra.mxu0 %v346
    %v414 = vpop.f32.mrf.mxu0
    %v415 = vadd.f32 0.0, %v414
    %416 = vmatmul.f32.gmra.mxu0 %v349
    %v417 = vpop.f32.mrf.mxu0
    %v418 = vadd.f32 0.0, %v417
    %419 = vmatmul.f32.gmra.mxu0 %v352
    %v420 = vpop.f32.mrf.mxu0
    %v421 = vadd.f32 0.0, %v420
    %422 = vmatmul.f32.gmra.mxu0 %v355
    %v423 = vpop.f32.mrf.mxu0
    %v424 = vadd.f32 0.0, %v423
    %425 = vmatmul.f32.gmra.mxu0 %v358
    %v426 = vpop.f32.mrf.mxu0
    %v427 = vadd.f32 0.0, %v426
    %428 = vmatmul.f32.gmra.mxu0 %v361
    %v429 = vpop.f32.mrf.mxu0
    %v430 = vadd.f32 0.0, %v429
    %431 = vmatmul.f32.gmra.mxu0 %v364
    %v432 = vpop.f32.mrf.mxu0
    %v433 = vadd.f32 0.0, %v432
    %434 = vmatmul.f32.gmra.mxu0 %v367
    %v435 = vpop.f32.mrf.mxu0
    %v436 = vadd.f32 0.0, %v435
    %437 = vmatmul.f32.gmra.mxu0 %v370
    %v438 = vpop.f32.mrf.mxu0
    %v439 = vadd.f32 0.0, %v438
    %440 = vmatmul.f32.gmra.mxu0 %v373
    %v441 = vpop.f32.mrf.mxu0
    %v442 = vadd.f32 0.0, %v441
    %443 = vmatmul.f32.gmra.mxu0 %v376
    %v444 = vpop.f32.mrf.mxu0
    %v445 = vadd.f32 0.0, %v444
    %446 = vmatmul.f32.gmra.mxu0 %v379
    %v447 = vpop.f32.mrf.mxu0
    %v448 = vadd.f32 0.0, %v447
    %449 = vmatmul.f32.gmra.mxu0 %v382
    %v450 = vpop.f32.mrf.mxu0
    %v451 = vadd.f32 0.0, %v450
    %452 = vdwg.mxu0
    %v453 = vmul.f32 %v406, 0.5
    %v454 = vmul.f32 %v409, 0.5
    %v455 = vmul.f32 %v412, 0.5
    %v456 = vmul.f32 %v415, 0.5
    %v457 = vmul.f32 %v418, 0.5
    %v458 = vmul.f32 %v421, 0.5
    %v459 = vmul.f32 %v424, 0.5
    %v460 = vmul.f32 %v427, 0.5
    %v461 = vmul.f32 %v430, 0.5
    %v462 = vmul.f32 %v433, 0.5
    %v463 = vmul.f32 %v436, 0.5
    %v464 = vmul.f32 %v439, 0.5
    %v465 = vmul.f32 %v442, 0.5
    %v466 = vmul.f32 %v445, 0.5
    %v467 = vmul.f32 %v448, 0.5
    %v468 = vmul.f32 %v451, 0.5
    %469 = vrot.lane.b32.xlu0 %v34, 80
    %v470 = vpop.permute.xlu0 %469
    %471 = vrot.lane.b32.xlu0 %v35, 80
    %v472 = vpop.permute.xlu0 %471
    %473 = vrot.lane.b32.xlu0 %v36, 80
    %v474 = vpop.permute.xlu0 %473
    %475 = vrot.lane.b32.xlu0 %v37, 80
    %v476 = vpop.permute.xlu0 %475
    %477 = vrot.lane.b32.xlu0 %v38, 80
    %v478 = vpop.permute.xlu0 %477
    %479 = vrot.lane.b32.xlu0 %v39, 80
    %v480 = vpop.permute.xlu0 %479
    %481 = vrot.lane.b32.xlu0 %v40, 80
    %v482 = vpop.permute.xlu0 %481
    %483 = vrot.lane.b32.xlu0 %v41, 80
    %v484 = vpop.permute.xlu0 %483
    %485 = vrot.lane.b32.xlu0 %v42, 80
    %v486 = vpop.permute.xlu0 %485
    %487 = vrot.lane.b32.xlu0 %v43, 80
    %v488 = vpop.permute.xlu0 %487
    %489 = vrot.lane.b32.xlu0 %v44, 80
    %v490 = vpop.permute.xlu0 %489
    %491 = vrot.lane.b32.xlu0 %v45, 80
    %v492 = vpop.permute.xlu0 %491
    %493 = vrot.lane.b32.xlu0 %v46, 80
    %v494 = vpop.permute.xlu0 %493
    %495 = vrot.lane.b32.xlu0 %v47, 80
    %v496 = vpop.permute.xlu0 %495
    %497 = vrot.lane.b32.xlu0 %v48, 80
    %v498 = vpop.permute.xlu0 %497
    %499 = vrot.lane.b32.xlu0 %v49, 80
    %v500 = vpop.permute.xlu0 %499
    %v517 = vadd.f32 %v453, %v470
    %v518 = vadd.f32 %v454, %v472
    %v519 = vadd.f32 %v455, %v474
    %v520 = vadd.f32 %v456, %v476
    %v521 = vadd.f32 %v457, %v478
    %v522 = vadd.f32 %v458, %v480
    %v523 = vadd.f32 %v459, %v482
    %v524 = vadd.f32 %v460, %v484
    %v525 = vadd.f32 %v461, %v486
    %v526 = vadd.f32 %v462, %v488
    %v527 = vadd.f32 %v463, %v490
    %v528 = vadd.f32 %v464, %v492
    %v529 = vadd.f32 %v465, %v494
    %v530 = vadd.f32 %v466, %v496
    %v531 = vadd.f32 %v467, %v498
    %v532 = vadd.f32 %v468, %v500
    %v533 = vsel %vm152, %v517, -inf
    %534 = vmax.xlane.f32.xlu0 %v533
    %v535 = vpop.xlane.xlu0 %534
    %v536 = vsel %vm152, %v518, -inf
    %537 = vmax.xlane.f32.xlu0 %v536
    %v538 = vpop.xlane.xlu0 %537
    %v539 = vsel %vm152, %v519, -inf
    %540 = vmax.xlane.f32.xlu0 %v539
    %v541 = vpop.xlane.xlu0 %540
    %v542 = vsel %vm152, %v520, -inf
    %543 = vmax.xlane.f32.xlu0 %v542
    %v544 = vpop.xlane.xlu0 %543
    %v545 = vsel %vm152, %v521, -inf
    %546 = vmax.xlane.f32.xlu0 %v545
    %v547 = vpop.xlane.xlu0 %546
    %v548 = vsel %vm152, %v522, -inf
    %549 = vmax.xlane.f32.xlu0 %v548
    %v550 = vpop.xlane.xlu0 %549
    %v551 = vsel %vm152, %v523, -inf
    %552 = vmax.xlane.f32.xlu0 %v551
    %v553 = vpop.xlane.xlu0 %552
    %v554 = vsel %vm152, %v524, -inf
    %555 = vmax.xlane.f32.xlu0 %v554
    %v556 = vpop.xlane.xlu0 %555
    %v557 = vsel %vm152, %v525, -inf
    %558 = vmax.xlane.f32.xlu0 %v557
    %v559 = vpop.xlane.xlu0 %558
    %v560 = vsel %vm152, %v526, -inf
    %561 = vmax.xlane.f32.xlu0 %v560
    %v562 = vpop.xlane.xlu0 %561
    %v563 = vsel %vm152, %v527, -inf
    %564 = vmax.xlane.f32.xlu0 %v563
    %v565 = vpop.xlane.xlu0 %564
    %v566 = vsel %vm152, %v528, -inf
    %567 = vmax.xlane.f32.xlu0 %v566
    %v568 = vpop.xlane.xlu0 %567
    %v569 = vsel %vm152, %v529, -inf
    %570 = vmax.xlane.f32.xlu0 %v569
    %v571 = vpop.xlane.xlu0 %570
    %v572 = vsel %vm152, %v530, -inf
    %573 = vmax.xlane.f32.xlu0 %v572
    %v574 = vpop.xlane.xlu0 %573
    %v575 = vsel %vm152, %v531, -inf
    %576 = vmax.xlane.f32.xlu0 %v575
    %v577 = vpop.xlane.xlu0 %576
    %v578 = vsel %vm152, %v532, -inf
    %579 = vmax.xlane.f32.xlu0 %v578
    %v580 = vpop.xlane.xlu0 %579
    %v581 = vsub.f32 %v517, %v535
    %v582 = vsub.f32 %v518, %v538
    %v583 = vsub.f32 %v519, %v541
    %v584 = vsub.f32 %v520, %v544
    %v585 = vsub.f32 %v521, %v547
    %v586 = vsub.f32 %v522, %v550
    %v587 = vsub.f32 %v523, %v553
    %v588 = vsub.f32 %v524, %v556
    %v589 = vsub.f32 %v525, %v559
    %v590 = vsub.f32 %v526, %v562
    %v591 = vsub.f32 %v527, %v565
    %v592 = vsub.f32 %v528, %v568
    %v593 = vsub.f32 %v529, %v571
    %v594 = vsub.f32 %v530, %v574
    %v595 = vsub.f32 %v531, %v577
    %v596 = vsub.f32 %v532, %v580
    %v597 = vmul.f32 %v581, 1.442695
    %v598 = vpow.pop %v597
    %v599 = vmul.f32 %v582, 1.442695
    %v600 = vpow.pop %v599
    %v601 = vmul.f32 %v583, 1.442695
    %v602 = vpow.pop %v601
    %v603 = vmul.f32 %v584, 1.442695
    %v604 = vpow.pop %v603
    %v605 = vmul.f32 %v585, 1.442695
    %v606 = vpow.pop %v605
    %v607 = vmul.f32 %v586, 1.442695
    %v608 = vpow.pop %v607
    %v609 = vmul.f32 %v587, 1.442695
    %v610 = vpow.pop %v609
    %v611 = vmul.f32 %v588, 1.442695
    %v612 = vpow.pop %v611
    %v613 = vmul.f32 %v589, 1.442695
    %v614 = vpow.pop %v613
    %v615 = vmul.f32 %v590, 1.442695
    %v616 = vpow.pop %v615
    %v617 = vmul.f32 %v591, 1.442695
    %v618 = vpow.pop %v617
    %v619 = vmul.f32 %v592, 1.442695
    %v620 = vpow.pop %v619
    %v621 = vmul.f32 %v593, 1.442695
    %v622 = vpow.pop %v621
    %v623 = vmul.f32 %v594, 1.442695
    %v624 = vpow.pop %v623
    %v625 = vmul.f32 %v595, 1.442695
    %v626 = vpow.pop %v625
    %v627 = vmul.f32 %v596, 1.442695
    %v628 = vpow.pop %v627
    %v629 = vsel %vm152, %v598, 0.0
    %630 = vadd.xlane.f32.xlu0 %v629
    %v631 = vpop.xlane.xlu0 %630
    %v632 = vsel %vm152, %v600, 0.0
    %633 = vadd.xlane.f32.xlu0 %v632
    %v634 = vpop.xlane.xlu0 %633
    %v635 = vsel %vm152, %v602, 0.0
    %636 = vadd.xlane.f32.xlu0 %v635
    %v637 = vpop.xlane.xlu0 %636
    %v638 = vsel %vm152, %v604, 0.0
    %639 = vadd.xlane.f32.xlu0 %v638
    %v640 = vpop.xlane.xlu0 %639
    %v641 = vsel %vm152, %v606, 0.0
    %642 = vadd.xlane.f32.xlu0 %v641
    %v643 = vpop.xlane.xlu0 %642
    %v644 = vsel %vm152, %v608, 0.0
    %645 = vadd.xlane.f32.xlu0 %v644
    %v646 = vpop.xlane.xlu0 %645
    %v647 = vsel %vm152, %v610, 0.0
    %648 = vadd.xlane.f32.xlu0 %v647
    %v649 = vpop.xlane.xlu0 %648
    %v650 = vsel %vm152, %v612, 0.0
    %651 = vadd.xlane.f32.xlu0 %v650
    %v652 = vpop.xlane.xlu0 %651
    %v653 = vsel %vm152, %v614, 0.0
    %654 = vadd.xlane.f32.xlu0 %v653
    %v655 = vpop.xlane.xlu0 %654
    %v656 = vsel %vm152, %v616, 0.0
    %657 = vadd.xlane.f32.xlu0 %v656
    %v658 = vpop.xlane.xlu0 %657
    %v659 = vsel %vm152, %v618, 0.0
    %660 = vadd.xlane.f32.xlu0 %v659
    %v661 = vpop.xlane.xlu0 %660
    %v662 = vsel %vm152, %v620, 0.0
    %663 = vadd.xlane.f32.xlu0 %v662
    %v664 = vpop.xlane.xlu0 %663
    %v665 = vsel %vm152, %v622, 0.0
    %666 = vadd.xlane.f32.xlu0 %v665
    %v667 = vpop.xlane.xlu0 %666
    %v668 = vsel %vm152, %v624, 0.0
    %669 = vadd.xlane.f32.xlu0 %v668
    %v670 = vpop.xlane.xlu0 %669
    %v671 = vsel %vm152, %v626, 0.0
    %672 = vadd.xlane.f32.xlu0 %v671
    %v673 = vpop.xlane.xlu0 %672
    %v674 = vsel %vm152, %v628, 0.0
    %675 = vadd.xlane.f32.xlu0 %v674
    %v676 = vpop.xlane.xlu0 %675
    %v677 = vrcp.pop %v631
    %v678 = vrcp.pop %v634
    %v679 = vrcp.pop %v637
    %v680 = vrcp.pop %v640
    %v681 = vrcp.pop %v643
    %v682 = vrcp.pop %v646
    %v683 = vrcp.pop %v649
    %v684 = vrcp.pop %v652
    %v685 = vrcp.pop %v655
    %v686 = vrcp.pop %v658
    %v687 = vrcp.pop %v661
    %v688 = vrcp.pop %v664
    %v689 = vrcp.pop %v667
    %v690 = vrcp.pop %v670
    %v691 = vrcp.pop %v673
    %v692 = vrcp.pop %v676
    %v693 = vmul.f32 %v598, %v677
    %v694 = vmul.f32 %v600, %v678
    %v695 = vmul.f32 %v602, %v679
    %v696 = vmul.f32 %v604, %v680
    %v697 = vmul.f32 %v606, %v681
    %v698 = vmul.f32 %v608, %v682
    %v699 = vmul.f32 %v610, %v683
    %v700 = vmul.f32 %v612, %v684
    %v701 = vmul.f32 %v614, %v685
    %v702 = vmul.f32 %v616, %v686
    %v703 = vmul.f32 %v618, %v687
    %v704 = vmul.f32 %v620, %v688
    %v705 = vmul.f32 %v622, %v689
    %v706 = vmul.f32 %v624, %v690
    %v707 = vmul.f32 %v626, %v691
    %v708 = vmul.f32 %v628, %v692
    %709 = vrot.lane.b32.xlu0 %v148, 64
    %v710 = vpop.permute.xlu0 %709
    %711 = vrot.lane.b32.xlu0 %v150, 64
    %v712 = vpop.permute.xlu0 %711
    %v716 = vsel %vm152, %v693, 0
    %v719 = vsel %vm152, %v694, 0
    %v722 = vsel %vm152, %v695, 0
    %v725 = vsel %vm152, %v696, 0
    %v728 = vsel %vm152, %v697, 0
    %v731 = vsel %vm152, %v698, 0
    %v734 = vsel %vm152, %v699, 0
    %v737 = vsel %vm152, %v700, 0
    %v740 = vsel %vm152, %v701, 0
    %v743 = vsel %vm152, %v702, 0
    %v746 = vsel %vm152, %v703, 0
    %v749 = vsel %vm152, %v704, 0
    %v752 = vsel %vm152, %v705, 0
    %v755 = vsel %vm152, %v706, 0
    %v758 = vsel %vm152, %v707, 0
    %v761 = vsel %vm152, %v708, 0
    %763 = vmatpush.msra.mxu0 0.0
    %764 = vmatpush.msra.mxu0 0.0
    %765 = vmatpush.msra.mxu0 0.0
    %766 = vmatpush.msra.mxu0 0.0
    %767 = vmatpush.msra.mxu0 0.0
    %768 = vmatpush.msra.mxu0 0.0
    %769 = vmatpush.msra.mxu0 0.0
    %770 = vmatpush.msra.mxu0 0.0
    %771 = vmatpush.msra.mxu0 0.0
    %772 = vmatpush.msra.mxu0 0.0
    %773 = vmatpush.msra.mxu0 0.0
    %774 = vmatpush.msra.mxu0 0.0
    %775 = vmatpush.msra.mxu0 0.0
    %776 = vmatpush.msra.mxu0 0.0
    %777 = vmatpush.msra.mxu0 %v712
    %778 = vmatpush.msra.mxu0 %v710
    %779 = vmatmul.f32.gmra.mxu0 %v716
    %v780 = vpop.f32.mrf.mxu0
    %v781 = vadd.f32 0.0, %v780
    %782 = vmatmul.f32.gmra.mxu0 %v719
    %v783 = vpop.f32.mrf.mxu0
    %v784 = vadd.f32 0.0, %v783
    %785 = vmatmul.f32.gmra.mxu0 %v722
    %v786 = vpop.f32.mrf.mxu0
    %v787 = vadd.f32 0.0, %v786
    %788 = vmatmul.f32.gmra.mxu0 %v725
    %v789 = vpop.f32.mrf.mxu0
    %v790 = vadd.f32 0.0, %v789
    %791 = vmatmul.f32.gmra.mxu0 %v728
    %v792 = vpop.f32.mrf.mxu0
    %v793 = vadd.f32 0.0, %v792
    %794 = vmatmul.f32.gmra.mxu0 %v731
    %v795 = vpop.f32.mrf.mxu0
    %v796 = vadd.f32 0.0, %v795
    %797 = vmatmul.f32.gmra.mxu0 %v734
    %v798 = vpop.f32.mrf.mxu0
    %v799 = vadd.f32 0.0, %v798
    %800 = vmatmul.f32.gmra.mxu0 %v737
    %v801 = vpop.f32.mrf.mxu0
    %v802 = vadd.f32 0.0, %v801
    %803 = vmatmul.f32.gmra.mxu0 %v740
    %v804 = vpop.f32.mrf.mxu0
    %v805 = vadd.f32 0.0, %v804
    %806 = vmatmul.f32.gmra.mxu0 %v743
    %v807 = vpop.f32.mrf.mxu0
    %v808 = vadd.f32 0.0, %v807
    %809 = vmatmul.f32.gmra.mxu0 %v746
    %v810 = vpop.f32.mrf.mxu0
    %v811 = vadd.f32 0.0, %v810
    %812 = vmatmul.f32.gmra.mxu0 %v749
    %v813 = vpop.f32.mrf.mxu0
    %v814 = vadd.f32 0.0, %v813
    %815 = vmatmul.f32.gmra.mxu0 %v752
    %v816 = vpop.f32.mrf.mxu0
    %v817 = vadd.f32 0.0, %v816
    %818 = vmatmul.f32.gmra.mxu0 %v755
    %v819 = vpop.f32.mrf.mxu0
    %v820 = vadd.f32 0.0, %v819
    %821 = vmatmul.f32.gmra.mxu0 %v758
    %v822 = vpop.f32.mrf.mxu0
    %v823 = vadd.f32 0.0, %v822
    %824 = vmatmul.f32.gmra.mxu0 %v761
    %v825 = vpop.f32.mrf.mxu0
    %v826 = vadd.f32 0.0, %v825
    %827 = vdwg.mxu0
    %v828 = vmul.f32 %v781, %v267
    %v829 = vmul.f32 %v784, %v269
    %v830 = vmul.f32 %v787, %v271
    %v831 = vmul.f32 %v790, %v273
    %v832 = vmul.f32 %v793, %v275
    %v833 = vmul.f32 %v796, %v277
    %v834 = vmul.f32 %v799, %v279
    %v835 = vmul.f32 %v802, %v281
    %v836 = vmul.f32 %v805, %v283
    %v837 = vmul.f32 %v808, %v285
    %v838 = vmul.f32 %v811, %v287
    %v839 = vmul.f32 %v814, %v289
    %v840 = vmul.f32 %v817, %v291
    %v841 = vmul.f32 %v820, %v293
    %v842 = vmul.f32 %v823, %v295
    %v843 = vmul.f32 %v826, %v297
    %860 = vrot.lane.b32.xlu0 %v828, 16
    %v861 = vpop.permute.xlu0 %860
    %862 = vrot.lane.b32.xlu0 %v829, 16
    %v863 = vpop.permute.xlu0 %862
    %864 = vrot.lane.b32.xlu0 %v830, 16
    %v865 = vpop.permute.xlu0 %864
    %866 = vrot.lane.b32.xlu0 %v831, 16
    %v867 = vpop.permute.xlu0 %866
    %868 = vrot.lane.b32.xlu0 %v832, 16
    %v869 = vpop.permute.xlu0 %868
    %870 = vrot.lane.b32.xlu0 %v833, 16
    %v871 = vpop.permute.xlu0 %870
    %872 = vrot.lane.b32.xlu0 %v834, 16
    %v873 = vpop.permute.xlu0 %872
    %874 = vrot.lane.b32.xlu0 %v835, 16
    %v875 = vpop.permute.xlu0 %874
    %876 = vrot.lane.b32.xlu0 %v836, 16
    %v877 = vpop.permute.xlu0 %876
    %878 = vrot.lane.b32.xlu0 %v837, 16
    %v879 = vpop.permute.xlu0 %878
    %880 = vrot.lane.b32.xlu0 %v838, 16
    %v881 = vpop.permute.xlu0 %880
    %882 = vrot.lane.b32.xlu0 %v839, 16
    %v883 = vpop.permute.xlu0 %882
    %884 = vrot.lane.b32.xlu0 %v840, 16
    %v885 = vpop.permute.xlu0 %884
    %886 = vrot.lane.b32.xlu0 %v841, 16
    %v887 = vpop.permute.xlu0 %886
    %888 = vrot.lane.b32.xlu0 %v842, 16
    %v889 = vpop.permute.xlu0 %888
    %890 = vrot.lane.b32.xlu0 %v843, 16
    %v891 = vpop.permute.xlu0 %890
    %v908 = vsel %vm152, %v693, %v861
    %v909 = vsel %vm152, %v694, %v863
    %v910 = vsel %vm152, %v695, %v865
    %v911 = vsel %vm152, %v696, %v867
    %v912 = vsel %vm152, %v697, %v869
    %v913 = vsel %vm152, %v698, %v871
    %v914 = vsel %vm152, %v699, %v873
    %v915 = vsel %vm152, %v700, %v875
    %v916 = vsel %vm152, %v701, %v877
    %v917 = vsel %vm152, %v702, %v879
    %v918 = vsel %vm152, %v703, %v881
    %v919 = vsel %vm152, %v704, %v883
    %v920 = vsel %vm152, %v705, %v885
    %v921 = vsel %vm152, %v706, %v887
    %v922 = vsel %vm152, %v707, %v889
    %v923 = vsel %vm152, %v708, %v891
    %924 = vmatpush.msra.mxu0 %v923
    %925 = vmatpush.msra.mxu0 %v922
    %926 = vmatpush.msra.mxu0 %v921
    %927 = vmatpush.msra.mxu0 %v920
    %928 = vmatpush.msra.mxu0 %v919
    %929 = vmatpush.msra.mxu0 %v918
    %930 = vmatpush.msra.mxu0 %v917
    %931 = vmatpush.msra.mxu0 %v916
    %932 = vmatpush.msra.mxu0 %v915
    %933 = vmatpush.msra.mxu0 %v914
    %934 = vmatpush.msra.mxu0 %v913
    %935 = vmatpush.msra.mxu0 %v912
    %936 = vmatpush.msra.mxu0 %v911
    %937 = vmatpush.msra.mxu0 %v910
    %938 = vmatpush.msra.mxu0 %v909
    %939 = vmatpush.msra.mxu0 %v908
    %940 = vmatmul.f32.gmra.mxu0 %v50
    %v941 = vpop.f32.mrf.mxu0
    %v942 = vadd.f32 0.0, %v941
    %943 = vmatmul.f32.gmra.mxu0 %v51
    %v944 = vpop.f32.mrf.mxu0
    %v945 = vadd.f32 0.0, %v944
    %946 = vdwg.mxu0
    %v947 = vmul.f32 %v942, 0.125
    %v948 = vmul.f32 %v945, 0.125
    %v949 = vld [vmem:[%s1 + $0x20] sm:$0xf]
    %v950 = vld [vmem:[%s1 + $0x44] sm:$0xf]
    %v951 = vld [vmem:[%s1 + $0x68] sm:$0xf]
    %v952 = vld [vmem:[%s1 + $0x8c] sm:$0xf]
    %v953 = vpack.c.bf16 %v945, %v942
    %v954 = vld [vmem:[%s3 + $0x10] sm:$0x1]
    %v955 = vperm.slane %v954, 0
    %957 = vrot.lane.b32.xlu0 %v953, 112
    %v958 = vpop.permute.xlu0 %957
    %v963 = vunpack.c.l.b16 %v949
    %v964 = vunpack.c.l.b16 %v950
    %v965 = vunpack.c.l.b16 %v951
    %v966 = vunpack.c.l.b16 %v952
    %v967 = vpack.c.b16 %v964, %v963
    %v968 = vpack.c.b16 %v966, %v965
    %v972 = vsel %vm58, %v958, 0
    %974 = vmatpush.bf16.msra.mxu0 0
    %975 = vmatpush.bf16.msra.mxu0 0
    %976 = vmatpush.bf16.msra.mxu0 0
    %977 = vmatpush.bf16.msra.mxu0 0
    %978 = vmatpush.bf16.msra.mxu0 0
    %979 = vmatpush.bf16.msra.mxu0 0
    %980 = vmatpush.bf16.msra.mxu0 %v968
    %981 = vmatpush.bf16.msra.mxu0 %v967
    %982 = vmatmul.bf16.gmra.mxu0 %v972
    %v983 = vpop.f32.mrf.mxu0
    %v984 = vadd.f32 %v955, %v983
    %v985 = vpop.f32.mrf.mxu0
    %v986 = vadd.f32 %v955, %v985
    %987 = vdwg.mxu0
    %v988 = vadd.f32 %v28, %v984
    %v989 = vadd.f32 %v29, %v986
    %v990 = vsel %vm58, %v988, 0.0
    %991 = vadd.xlane.f32.xlu0 %v990
    %v992 = vpop.xlane.xlu0 %991
    %v993 = vsel %vm58, %v989, 0.0
    %994 = vadd.xlane.f32.xlu0 %v993
    %v995 = vpop.xlane.xlu0 %994
    %v996 = vmul.f32 %v992, %v71
    %v997 = vmul.f32 %v995, %v71
    %v998 = vsub.f32 %v988, %v996
    %v999 = vsub.f32 %v989, %v997
    %v1000 = vmul.f32 %v998, %v998
    %v1001 = vmul.f32 %v999, %v999
    %v1002 = vsel %vm58, %v1000, 0.0
    %1003 = vadd.xlane.f32.xlu0 %v1002
    %v1004 = vpop.xlane.xlu0 %1003
    %v1005 = vsel %vm58, %v1001, 0.0
    %1006 = vadd.xlane.f32.xlu0 %v1005
    %v1007 = vpop.xlane.xlu0 %1006
    %v1008 = vmul.f32 %v1004, %v71
    %v1009 = vmul.f32 %v1007, %v71
    %v1010 = vadd.f32 %v1008, 1e-05
    %v1011 = vadd.f32 %v1009, 1e-05
    %v1012 = vrsqrt.pop %v1010
    %v1013 = vmul.f32 %v1012, %v1010
    %v1014 = vmul.f32 %v1013, %v1012
    %v1015 = vmul.f32 0.5, %v1014
    %v1016 = vsub.f32 1.5, %v1015
    %v1017 = vmul.f32 %v1012, %v1016
    %vm1018 = vweird.f32 %v1010
    %vm1019 = vweird.f32 %v1012
    %vm1020 = vmor %vm1018, %vm1019
    %v1021 = vsel %vm1020, %v1012, %v1017
    %v1022 = vrsqrt.pop %v1011
    %v1023 = vmul.f32 %v1022, %v1011
    %v1024 = vmul.f32 %v1023, %v1022
    %v1025 = vmul.f32 0.5, %v1024
    %v1026 = vsub.f32 1.5, %v1025
    %v1027 = vmul.f32 %v1022, %v1026
    %vm1028 = vweird.f32 %v1011
    %vm1029 = vweird.f32 %v1022
    %vm1030 = vmor %vm1028, %vm1029
    %v1031 = vsel %vm1030, %v1022, %v1027
    %v1032 = vmul.f32 %v998, %v1021
    %v1033 = vmul.f32 %v999, %v1031
    %v1034 = vperm.slane %v32, 0
    %v1035 = vmul.f32 %v1032, %v1034
    %v1036 = vmul.f32 %v1033, %v1034
    %v1037 = vperm.slane %v33, 0
    %v1038 = vadd.f32 %v1035, %v1037
    %v1039 = vadd.f32 %v1036, %v1037
    %v1040 = vpack.c.bf16 %v1039, %v1038
    %1041 = vrot.lane.b32.xlu0 %v967, 96
    %v1042 = vpop.permute.xlu0 %1041
    %1043 = vrot.lane.b32.xlu0 %v968, 96
    %v1044 = vpop.permute.xlu0 %1043
    %1048 = vrot.lane.b32.xlu0 %v955, 96
    %v1049 = vpop.permute.xlu0 %1048
    %v1052 = vsel %vm58, %v1040, 0
    %1054 = vmatpush.bf16.msra.mxu0 0
    %1055 = vmatpush.bf16.msra.mxu0 0
    %1056 = vmatpush.bf16.msra.mxu0 0
    %1057 = vmatpush.bf16.msra.mxu0 0
    %1058 = vmatpush.bf16.msra.mxu0 0
    %1059 = vmatpush.bf16.msra.mxu0 0
    %1060 = vmatpush.bf16.msra.mxu0 %v1044
    %1061 = vmatpush.bf16.msra.mxu0 %v1042
    %1062 = vmatmul.bf16.gmra.mxu0 %v1052
    %v1063 = vpop.f32.mrf.mxu0
    %v1064 = vadd.f32 %v1049, %v1063
    %v1065 = vpop.f32.mrf.mxu0
    %v1066 = vadd.f32 %v1049, %v1065
    %1067 = vdwg.mxu0
    %vm1068 = vcmask 31744
    %v1069 = vsel %vm1068, %v1064, -inf
    %1070 = vmax.xlane.f32.xlu0 %v1069
    %v1071 = vpop.xlane.xlu0 %1070
    %v1072 = vsel %vm1068, %v1066, -inf
    %1073 = vmax.xlane.f32.xlu0 %v1072
    %v1074 = vpop.xlane.xlu0 %1073
    %v1075 = vsub.f32 %v1064, %v1071
    %v1076 = vsub.f32 %v1066, %v1074
    %v1077 = vmul.f32 %v1075, 1.442695
    %v1078 = vpow.pop %v1077
    %v1079 = vmul.f32 %v1076, 1.442695
    %v1080 = vpow.pop %v1079
    %v1081 = vsel %vm1068, %v1078, 0.0
    %1082 = vadd.xlane.f32.xlu0 %v1081
    %v1083 = vpop.xlane.xlu0 %1082
    %v1084 = vsel %vm1068, %v1080, 0.0
    %1085 = vadd.xlane.f32.xlu0 %v1084
    %v1086 = vpop.xlane.xlu0 %1085
    %v1087 = vrcp.pop %v1083
    %v1088 = vmul.f32 %v1083, %v1087
    %v1089 = vsub.f32 1.0, %v1088
    %v1090 = vmul.f32 %v1087, %v1089
    %v1091 = vadd.f32 %v1087, %v1090
    %vm1092 = vweird.f32 %v1083
    %vm1093 = vweird.f32 %v1087
    %vm1094 = vmor %vm1092, %vm1093
    %v1095 = vsel %vm1094, %v1087, %v1091
    %v1096 = vand.u32 2147483647, %v1083
    %vm1097 = vcmp.eq.f32.partialorder %v1096, 8.507059e+37
    %v1098 = vand.u32 %v1083, 2147483648
    %v1099 = vor.u32 1.1754944e-38, %v1098
    %v1100 = vsel %vm1097, %v1099, %v1095
    %v1101 = vmul.f32 %v1078, %v1100
    %v1102 = vrcp.pop %v1086
    %v1103 = vmul.f32 %v1086, %v1102
    %v1104 = vsub.f32 1.0, %v1103
    %v1105 = vmul.f32 %v1102, %v1104
    %v1106 = vadd.f32 %v1102, %v1105
    %vm1107 = vweird.f32 %v1086
    %vm1108 = vweird.f32 %v1102
    %vm1109 = vmor %vm1107, %vm1108
    %v1110 = vsel %vm1109, %v1102, %v1106
    %v1111 = vand.u32 2147483647, %v1086
    %vm1112 = vcmp.eq.f32.partialorder %v1111, 8.507059e+37
    %v1113 = vand.u32 %v1086, 2147483648
    %v1114 = vor.u32 1.1754944e-38, %v1113
    %v1115 = vsel %vm1112, %v1114, %v1110
    %v1116 = vmul.f32 %v1080, %v1115
    %vm1117 = vcmask 48160
    %v1118 = vsel %vm1117, %v1064, -inf
    %1119 = vmax.xlane.f32.xlu0 %v1118
    %v1120 = vpop.xlane.xlu0 %1119
    %v1121 = vsel %vm1117, %v1066, -inf
    %1122 = vmax.xlane.f32.xlu0 %v1121
    %v1123 = vpop.xlane.xlu0 %1122
    %v1124 = vsub.f32 %v1064, %v1120
    %v1125 = vsub.f32 %v1066, %v1123
    %v1126 = vmul.f32 %v1124, 1.442695
    %v1127 = vpow.pop %v1126
    %v1128 = vmul.f32 %v1125, 1.442695
    %v1129 = vpow.pop %v1128
    %1132 = vrot.lane.b32.xlu0 %v1127, 124
    %v1133 = vpop.permute.xlu0 %1132
    %1134 = vrot.lane.b32.xlu0 %v1129, 124
    %v1135 = vpop.permute.xlu0 %1134
    %vm1138 = vcmask 15360
    %v1139 = vsel %vm1138, %v1133, 0.0
    %1140 = vadd.xlane.f32.xlu0 %v1139
    %v1141 = vpop.xlane.xlu0 %1140
    %v1142 = vsel %vm1138, %v1135, 0.0
    %1143 = vadd.xlane.f32.xlu0 %v1142
    %v1144 = vpop.xlane.xlu0 %1143
    %v1145 = vrcp.pop %v1141
    %v1146 = vmul.f32 %v1141, %v1145
    %v1147 = vsub.f32 1.0, %v1146
    %v1148 = vmul.f32 %v1145, %v1147
    %v1149 = vadd.f32 %v1145, %v1148
    %vm1150 = vweird.f32 %v1141
    %vm1151 = vweird.f32 %v1145
    %vm1152 = vmor %vm1150, %vm1151
    %v1153 = vsel %vm1152, %v1145, %v1149
    %v1154 = vand.u32 2147483647, %v1141
    %vm1155 = vcmp.eq.f32.partialorder %v1154, 8.507059e+37
    %v1156 = vand.u32 %v1141, 2147483648
    %v1157 = vor.u32 1.1754944e-38, %v1156
    %v1158 = vsel %vm1155, %v1157, %v1153
    %v1159 = vmul.f32 %v1127, %v1158
    %v1160 = vrcp.pop %v1144
    %v1161 = vmul.f32 %v1144, %v1160
    %v1162 = vsub.f32 1.0, %v1161
    %v1163 = vmul.f32 %v1160, %v1162
    %v1164 = vadd.f32 %v1160, %v1163
    %vm1165 = vweird.f32 %v1144
    %vm1166 = vweird.f32 %v1160
    %vm1167 = vmor %vm1165, %vm1166
    %v1168 = vsel %vm1167, %v1160, %v1164
    %v1169 = vand.u32 2147483647, %v1144
    %vm1170 = vcmp.eq.f32.partialorder %v1169, 8.507059e+37
    %v1171 = vand.u32 %v1144, 2147483648
    %v1172 = vor.u32 1.1754944e-38, %v1171
    %v1173 = vsel %vm1170, %v1172, %v1168
    %v1174 = vmul.f32 %v1129, %v1173
    %v1175 = vlaneseq
    %v1176 = vand.u32 %v1175, 127
    %v1177 = vsel %vm1068, %v1101, -inf
    %1178 = vmax.xlane.f32.xlu0 %v1177
    %v1179 = vpop.xlane.xlu0 %1178
    %v1180 = vsel %vm1068, %v1116, -inf
    %1181 = vmax.xlane.f32.xlu0 %v1180
    %v1182 = vpop.xlane.xlu0 %1181
    %vm1183 = vcmp.eq.f32.partialorder %v1101, %v1179
    %vm1184 = vcmp.eq.f32.partialorder %v1116, %v1182
    %v1185 = vsel %vm1183, %v1176, 4
    %v1186 = vsel %vm1184, %v1176, 4
    %v1187 = vsel %vm1068, %v1185, 2147483647
    %v1188 = vand.u32 %v1187, 65535
    %v1189 = vshra.s32 %v1187, 16
    %v1190 = vcvt.s32.f32 %v1188
    %v1191 = vcvt.s32.f32 %v1189
    %1192 = vmin.xlane.f32.xlu0 %v1191
    %v1193 = vpop.xlane.xlu0 %1192
    %vm1194 = vcmp.eq.f32.partialorder %v1191, %v1193
    %v1195 = vsel %vm1194, %v1190, inf
    %1196 = vmin.xlane.f32.xlu0 %v1195
    %v1197 = vpop.xlane.xlu0 %1196
    %v1198 = vcvt.f32.s32 %v1197
    %v1199 = vcvt.f32.s32 %v1193
    %v1200 = vshll.u32 %v1199, 16
    %v1201 = vadd.s32 %v1200, %v1198
    %v1202 = vsel %vm1068, %v1186, 2147483647
    %v1203 = vand.u32 %v1202, 65535
    %v1204 = vshra.s32 %v1202, 16
    %v1205 = vcvt.s32.f32 %v1203
    %v1206 = vcvt.s32.f32 %v1204
    %1207 = vmin.xlane.f32.xlu0 %v1206
    %v1208 = vpop.xlane.xlu0 %1207
    %vm1209 = vcmp.eq.f32.partialorder %v1206, %v1208
    %v1210 = vsel %vm1209, %v1205, inf
    %1211 = vmin.xlane.f32.xlu0 %v1210
    %v1212 = vpop.xlane.xlu0 %1211
    %v1213 = vcvt.f32.s32 %v1212
    %v1214 = vcvt.f32.s32 %v1208
    %v1215 = vshll.u32 %v1214, 16
    %v1216 = vadd.s32 %v1215, %v1213
    %vm1217 = vcmp.eq.s32.totalorder %v1176, %v1201
    %vm1218 = vcmp.eq.s32.totalorder %v1176, %v1216
    %v1219 = vsel %vm1217, -inf, %v1101
    %v1220 = vsel %vm1218, -inf, %v1116
    %v1221 = vsel %vm1068, %v1219, -inf
    %1222 = vmax.xlane.f32.xlu0 %v1221
    %v1223 = vpop.xlane.xlu0 %1222
    %v1224 = vsel %vm1068, %v1220, -inf
    %1225 = vmax.xlane.f32.xlu0 %v1224
    %v1226 = vpop.xlane.xlu0 %1225
    %vm1227 = vcmp.eq.f32.partialorder %v1219, %v1223
    %vm1228 = vcmp.eq.f32.partialorder %v1220, %v1226
    %v1229 = vsel %vm1227, %v1176, 4
    %v1230 = vsel %vm1228, %v1176, 4
    %v1231 = vsel %vm1068, %v1229, 2147483647
    %v1232 = vand.u32 %v1231, 65535
    %v1233 = vshra.s32 %v1231, 16
    %v1234 = vcvt.s32.f32 %v1232
    %v1235 = vcvt.s32.f32 %v1233
    %1236 = vmin.xlane.f32.xlu0 %v1235
    %v1237 = vpop.xlane.xlu0 %1236
    %vm1238 = vcmp.eq.f32.partialorder %v1235, %v1237
    %v1239 = vsel %vm1238, %v1234, inf
    %1240 = vmin.xlane.f32.xlu0 %v1239
    %v1241 = vpop.xlane.xlu0 %1240
    %v1242 = vcvt.f32.s32 %v1241
    %v1243 = vcvt.f32.s32 %v1237
    %v1244 = vshll.u32 %v1243, 16
    %v1245 = vadd.s32 %v1244, %v1242
    %v1246 = vsel %vm1068, %v1230, 2147483647
    %v1247 = vand.u32 %v1246, 65535
    %v1248 = vshra.s32 %v1246, 16
    %v1249 = vcvt.s32.f32 %v1247
    %v1250 = vcvt.s32.f32 %v1248
    %1251 = vmin.xlane.f32.xlu0 %v1250
    %v1252 = vpop.xlane.xlu0 %1251
    %vm1253 = vcmp.eq.f32.partialorder %v1250, %v1252
    %v1254 = vsel %vm1253, %v1249, inf
    %1255 = vmin.xlane.f32.xlu0 %v1254
    %v1256 = vpop.xlane.xlu0 %1255
    %v1257 = vcvt.f32.s32 %v1256
    %v1258 = vcvt.f32.s32 %v1252
    %v1259 = vshll.u32 %v1258, 16
    %v1260 = vadd.s32 %v1259, %v1257
    %vm1261 = vcmp.eq.s32.totalorder %v1176, %v1245
    %vm1262 = vcmp.eq.s32.totalorder %v1176, %v1260
    %vm1263 = vmor %vm1217, %vm1261
    %vm1264 = vmor %vm1218, %vm1262
    %v1265 = vsel %vm1263, 1, 0
    %v1266 = vsel %vm1264, 1, 0
    %v1267 = vcvt.s32.f32 %v1265
    %v1268 = vcvt.s32.f32 %v1266
    %v1269 = vmul.f32 %v1101, %v1267
    %v1270 = vmul.f32 %v1116, %v1268
    %v1271 = vsel %vm1068, %v1269, %v1159
    %v1272 = vsel %vm1068, %v1270, %v1174
    %v1273 = vld [vmem:[%s1] sm:$0xff]
    %v1274 = vld [vmem:[%s1 + $0x8] sm:$0xff]
    %v1275 = vld [vmem:[%s1 + $0x10] sm:$0xff]
    %v1276 = vld [vmem:[%s1 + $0x24] sm:$0xff]
    %v1277 = vld [vmem:[%s1 + $0x2c] sm:$0xff]
    %v1278 = vld [vmem:[%s1 + $0x34] sm:$0xff]
    %v1279 = vld [vmem:[%s1 + $0x48] sm:$0xff]
    %v1280 = vld [vmem:[%s1 + $0x50] sm:$0xff]
    %v1281 = vld [vmem:[%s1 + $0x58] sm:$0xff]
    %v1282 = vld [vmem:[%s1 + $0x6c] sm:$0xff]
    %v1283 = vld [vmem:[%s1 + $0x74] sm:$0xff]
    %v1284 = vld [vmem:[%s1 + $0x7c] sm:$0xff]
    %v1285 = vld [vmem:[%s3] ss:$2 sm:$0x3f]
    %v1287 = vperm.slane %v1285, 0
    %v1288 = vperm.slane %v1285, 1
    %v1289 = vperm.slane %v1285, 2
    %v1290 = vperm.slane %v1285, 3
    %v1291 = vperm.slane %v1285, 4
    %v1292 = vperm.slane %v1285, 5
    %v1311 = vunpack.c.l.b16 %v1273
    %v1312 = vunpack.c.h.b16 %v1273
    %v1313 = vunpack.c.l.b16 %v1274
    %v1314 = vunpack.c.h.b16 %v1274
    %v1315 = vunpack.c.l.b16 %v1275
    %v1316 = vunpack.c.h.b16 %v1275
    %v1317 = vunpack.c.l.b16 %v1276
    %v1318 = vunpack.c.h.b16 %v1276
    %v1319 = vunpack.c.l.b16 %v1277
    %v1320 = vunpack.c.h.b16 %v1277
    %v1321 = vunpack.c.l.b16 %v1278
    %v1322 = vunpack.c.h.b16 %v1278
    %v1323 = vunpack.c.l.b16 %v1279
    %v1324 = vunpack.c.h.b16 %v1279
    %v1325 = vunpack.c.l.b16 %v1280
    %v1326 = vunpack.c.h.b16 %v1280
    %v1327 = vunpack.c.l.b16 %v1281
    %v1328 = vunpack.c.h.b16 %v1281
    %v1329 = vunpack.c.l.b16 %v1282
    %v1330 = vunpack.c.h.b16 %v1282
    %v1331 = vunpack.c.l.b16 %v1283
    %v1332 = vunpack.c.h.b16 %v1283
    %v1333 = vunpack.c.l.b16 %v1284
    %v1334 = vunpack.c.h.b16 %v1284
    %v1335 = vpack.c.b16 %v1317, %v1311
    %v1336 = vpack.c.b16 %v1318, %v1312
    %v1337 = vpack.c.b16 %v1319, %v1313
    %v1338 = vpack.c.b16 %v1320, %v1314
    %v1339 = vpack.c.b16 %v1321, %v1315
    %v1340 = vpack.c.b16 %v1322, %v1316
    %v1341 = vpack.c.b16 %v1329, %v1323
    %v1342 = vpack.c.b16 %v1330, %v1324
    %v1343 = vpack.c.b16 %v1331, %v1325
    %v1344 = vpack.c.b16 %v1332, %v1326
    %v1345 = vpack.c.b16 %v1333, %v1327
    %v1346 = vpack.c.b16 %v1334, %v1328
    %1359 = vmatpush.bf16.msra.mxu0 0
    %1360 = vmatpush.bf16.msra.mxu0 0
    %1361 = vmatpush.bf16.msra.mxu0 0
    %1362 = vmatpush.bf16.msra.mxu0 0
    %1363 = vmatpush.bf16.msra.mxu0 0
    %1364 = vmatpush.bf16.msra.mxu0 0
    %1365 = vmatpush.bf16.msra.mxu0 %v1341
    %1366 = vmatpush.bf16.msra.mxu0 %v1335
    %1367 = vmatmul.bf16.gmra.mxu0 %v1052
    %v1368 = vpop.f32.mrf.mxu0
    %v1369 = vadd.f32 %v1287, %v1368
    %v1370 = vpop.f32.mrf.mxu0
    %v1371 = vadd.f32 %v1287, %v1370
    %1372 = vdwg.mxu0
    %1373 = vmatpush.bf16.msra.mxu0 0
    %1374 = vmatpush.bf16.msra.mxu0 0
    %1375 = vmatpush.bf16.msra.mxu0 0
    %1376 = vmatpush.bf16.msra.mxu0 0
    %1377 = vmatpush.bf16.msra.mxu0 0
    %1378 = vmatpush.bf16.msra.mxu0 0
    %1379 = vmatpush.bf16.msra.mxu0 %v1342
    %1380 = vmatpush.bf16.msra.mxu0 %v1336
    %1381 = vmatmul.bf16.gmra.mxu0 %v1052
    %v1382 = vpop.f32.mrf.mxu0
    %v1383 = vadd.f32 %v1288, %v1382
    %v1384 = vpop.f32.mrf.mxu0
    %v1385 = vadd.f32 %v1288, %v1384
    %1386 = vdwg.mxu0
    %1387 = vmatpush.bf16.msra.mxu0 0
    %1388 = vmatpush.bf16.msra.mxu0 0
    %1389 = vmatpush.bf16.msra.mxu0 0
    %1390 = vmatpush.bf16.msra.mxu0 0
    %1391 = vmatpush.bf16.msra.mxu0 0
    %1392 = vmatpush.bf16.msra.mxu0 0
    %1393 = vmatpush.bf16.msra.mxu0 %v1343
    %1394 = vmatpush.bf16.msra.mxu0 %v1337
    %1395 = vmatmul.bf16.gmra.mxu0 %v1052
    %v1396 = vpop.f32.mrf.mxu0
    %v1397 = vadd.f32 %v1289, %v1396
    %v1398 = vpop.f32.mrf.mxu0
    %v1399 = vadd.f32 %v1289, %v1398
    %1400 = vdwg.mxu0
    %1401 = vmatpush.bf16.msra.mxu0 0
    %1402 = vmatpush.bf16.msra.mxu0 0
    %1403 = vmatpush.bf16.msra.mxu0 0
    %1404 = vmatpush.bf16.msra.mxu0 0
    %1405 = vmatpush.bf16.msra.mxu0 0
    %1406 = vmatpush.bf16.msra.mxu0 0
    %1407 = vmatpush.bf16.msra.mxu0 %v1344
    %1408 = vmatpush.bf16.msra.mxu0 %v1338
    %1409 = vmatmul.bf16.gmra.mxu0 %v1052
    %v1410 = vpop.f32.mrf.mxu0
    %v1411 = vadd.f32 %v1290, %v1410
    %v1412 = vpop.f32.mrf.mxu0
    %v1413 = vadd.f32 %v1290, %v1412
    %1414 = vdwg.mxu0
    %1415 = vmatpush.bf16.msra.mxu0 0
    %1416 = vmatpush.bf16.msra.mxu0 0
    %1417 = vmatpush.bf16.msra.mxu0 0
    %1418 = vmatpush.bf16.msra.mxu0 0
    %1419 = vmatpush.bf16.msra.mxu0 0
    %1420 = vmatpush.bf16.msra.mxu0 0
    %1421 = vmatpush.bf16.msra.mxu0 %v1345
    %1422 = vmatpush.bf16.msra.mxu0 %v1339
    %1423 = vmatmul.bf16.gmra.mxu0 %v1052
    %v1424 = vpop.f32.mrf.mxu0
    %v1425 = vadd.f32 %v1291, %v1424
    %v1426 = vpop.f32.mrf.mxu0
    %v1427 = vadd.f32 %v1291, %v1426
    %1428 = vdwg.mxu0
    %1429 = vmatpush.bf16.msra.mxu0 0
    %1430 = vmatpush.bf16.msra.mxu0 0
    %1431 = vmatpush.bf16.msra.mxu0 0
    %1432 = vmatpush.bf16.msra.mxu0 0
    %1433 = vmatpush.bf16.msra.mxu0 0
    %1434 = vmatpush.bf16.msra.mxu0 0
    %1435 = vmatpush.bf16.msra.mxu0 %v1346
    %1436 = vmatpush.bf16.msra.mxu0 %v1340
    %1437 = vmatmul.bf16.gmra.mxu0 %v1052
    %v1438 = vpop.f32.mrf.mxu0
    %v1439 = vadd.f32 %v1292, %v1438
    %v1440 = vpop.f32.mrf.mxu0
    %v1441 = vadd.f32 %v1292, %v1440
    %1442 = vdwg.mxu0
    %v1443 = vmul.f32 %v1369, %v1369
    %v1444 = vmul.f32 %v1383, %v1383
    %v1445 = vmul.f32 %v1397, %v1397
    %v1446 = vmul.f32 %v1411, %v1411
    %v1447 = vmul.f32 %v1425, %v1425
    %v1448 = vmul.f32 %v1439, %v1439
    %v1449 = vmul.f32 %v1371, %v1371
    %v1450 = vmul.f32 %v1385, %v1385
    %v1451 = vmul.f32 %v1399, %v1399
    %v1452 = vmul.f32 %v1413, %v1413
    %v1453 = vmul.f32 %v1427, %v1427
    %v1454 = vmul.f32 %v1441, %v1441
    %v1455 = vmul.f32 %v1369, %v1443
    %v1456 = vmul.f32 %v1383, %v1444
    %v1457 = vmul.f32 %v1397, %v1445
    %v1458 = vmul.f32 %v1411, %v1446
    %v1459 = vmul.f32 %v1425, %v1447
    %v1460 = vmul.f32 %v1439, %v1448
    %v1461 = vmul.f32 %v1371, %v1449
    %v1462 = vmul.f32 %v1385, %v1450
    %v1463 = vmul.f32 %v1399, %v1451
    %v1464 = vmul.f32 %v1413, %v1452
    %v1465 = vmul.f32 %v1427, %v1453
    %v1466 = vmul.f32 %v1441, %v1454
    %v1467 = vmul.f32 %v1455, 0.044715
    %v1468 = vmul.f32 %v1456, 0.044715
    %v1469 = vmul.f32 %v1457, 0.044715
    %v1470 = vmul.f32 %v1458, 0.044715
    %v1471 = vmul.f32 %v1459, 0.044715
    %v1472 = vmul.f32 %v1460, 0.044715
    %v1473 = vmul.f32 %v1461, 0.044715
    %v1474 = vmul.f32 %v1462, 0.044715
    %v1475 = vmul.f32 %v1463, 0.044715
    %v1476 = vmul.f32 %v1464, 0.044715
    %v1477 = vmul.f32 %v1465, 0.044715
    %v1478 = vmul.f32 %v1466, 0.044715
    %v1479 = vadd.f32 %v1369, %v1467
    %v1480 = vadd.f32 %v1383, %v1468
    %v1481 = vadd.f32 %v1397, %v1469
    %v1482 = vadd.f32 %v1411, %v1470
    %v1483 = vadd.f32 %v1425, %v1471
    %v1484 = vadd.f32 %v1439, %v1472
    %v1485 = vadd.f32 %v1371, %v1473
    %v1486 = vadd.f32 %v1385, %v1474
    %v1487 = vadd.f32 %v1399, %v1475
    %v1488 = vadd.f32 %v1413, %v1476
    %v1489 = vadd.f32 %v1427, %v1477
    %v1490 = vadd.f32 %v1441, %v1478
    %v1491 = vmul.f32 %v1479, 0.7978846
    %v1492 = vmul.f32 %v1480, 0.7978846
    %v1493 = vmul.f32 %v1481, 0.7978846
    %v1494 = vmul.f32 %v1482, 0.7978846
    %v1495 = vmul.f32 %v1483, 0.7978846
    %v1496 = vmul.f32 %v1484, 0.7978846
    %v1497 = vmul.f32 %v1485, 0.7978846
    %v1498 = vmul.f32 %v1486, 0.7978846
    %v1499 = vmul.f32 %v1487, 0.7978846
    %v1500 = vmul.f32 %v1488, 0.7978846
    %v1501 = vmul.f32 %v1489, 0.7978846
    %v1502 = vmul.f32 %v1490, 0.7978846
    %v1503 = vtanh.pop %v1491
    %v1504 = vtanh.pop %v1492
    %v1505 = vtanh.pop %v1493
    %v1506 = vtanh.pop %v1494
    %v1507 = vtanh.pop %v1495
    %v1508 = vtanh.pop %v1496
    %v1509 = vtanh.pop %v1497
    %v1510 = vtanh.pop %v1498
    %v1511 = vtanh.pop %v1499
    %v1512 = vtanh.pop %v1500
    %v1513 = vtanh.pop %v1501
    %v1514 = vtanh.pop %v1502
    %v1515 = vadd.f32 %v1503, 1.0
    %v1516 = vadd.f32 %v1504, 1.0
    %v1517 = vadd.f32 %v1505, 1.0
    %v1518 = vadd.f32 %v1506, 1.0
    %v1519 = vadd.f32 %v1507, 1.0
    %v1520 = vadd.f32 %v1508, 1.0
    %v1521 = vadd.f32 %v1509, 1.0
    %v1522 = vadd.f32 %v1510, 1.0
    %v1523 = vadd.f32 %v1511, 1.0
    %v1524 = vadd.f32 %v1512, 1.0
    %v1525 = vadd.f32 %v1513, 1.0
    %v1526 = vadd.f32 %v1514, 1.0
    %v1527 = vmul.f32 %v1515, 0.5
    %v1528 = vmul.f32 %v1516, 0.5
    %v1529 = vmul.f32 %v1517, 0.5
    %v1530 = vmul.f32 %v1518, 0.5
    %v1531 = vmul.f32 %v1519, 0.5
    %v1532 = vmul.f32 %v1520, 0.5
    %v1533 = vmul.f32 %v1521, 0.5
    %v1534 = vmul.f32 %v1522, 0.5
    %v1535 = vmul.f32 %v1523, 0.5
    %v1536 = vmul.f32 %v1524, 0.5
    %v1537 = vmul.f32 %v1525, 0.5
    %v1538 = vmul.f32 %v1526, 0.5
    %v1539 = vmul.f32 %v1369, %v1527
    %v1540 = vmul.f32 %v1383, %v1528
    %v1541 = vmul.f32 %v1397, %v1529
    %v1542 = vmul.f32 %v1411, %v1530
    %v1543 = vmul.f32 %v1425, %v1531
    %v1544 = vmul.f32 %v1439, %v1532
    %v1545 = vmul.f32 %v1371, %v1533
    %v1546 = vmul.f32 %v1385, %v1534
    %v1547 = vmul.f32 %v1399, %v1535
    %v1548 = vmul.f32 %v1413, %v1536
    %v1549 = vmul.f32 %v1427, %v1537
    %v1550 = vmul.f32 %v1441, %v1538
    %vm1551 = vcmask 48128
    %v1553 = vsel %vm1551, %v1271, 0
    %v1556 = vsel %vm1551, %v1272, 0
    %vm1558 = vcmask 1045504
    %v1560 = vsel %vm1558, %v52, 0
    %v1563 = vsel %vm1558, %v53, 0
    %v1566 = vsel %vm1558, %v54, 0
    %v1569 = vsel %vm1558, %v55, 0
    %v1572 = vsel %vm1558, %v56, 0
    %v1575 = vsel %vm1558, %v57, 0
    %1577 = vmatpush.msra.mxu0 0.0
    %1578 = vmatpush.msra.mxu0 0.0
    %1579 = vmatpush.msra.mxu0 0.0
    %1580 = vmatpush.msra.mxu0 0.0
    %1581 = vmatpush.msra.mxu0 0.0
    %1582 = vmatpush.msra.mxu0 0.0
    %1583 = vmatpush.msra.mxu0 0.0
    %1584 = vmatpush.msra.mxu0 0.0
    %1585 = vmatpush.msra.mxu0 0.0
    %1586 = vmatpush.msra.mxu0 0.0
    %1587 = vmatpush.msra.mxu0 0.0
    %1588 = vmatpush.msra.mxu0 0.0
    %1589 = vmatpush.msra.mxu0 0.0
    %1590 = vmatpush.msra.mxu0 0.0
    %1591 = vmatpush.msra.mxu0 0.0
    %1592 = vmatpush.msra.mxu0 %v1560
    %1593 = vmatmul.f32.gmra.mxu0 %v1553
    %v1594 = vpop.f32.mrf.mxu0
    %v1595 = vadd.f32 0.0, %v1594
    %1596 = vmatmul.f32.gmra.mxu0 %v1556
    %v1597 = vpop.f32.mrf.mxu0
    %v1598 = vadd.f32 0.0, %v1597
    %1599 = vdwg.mxu0
    %1600 = vmatpush.msra.mxu0 0.0
    %1601 = vmatpush.msra.mxu0 0.0
    %1602 = vmatpush.msra.mxu0 0.0
    %1603 = vmatpush.msra.mxu0 0.0
    %1604 = vmatpush.msra.mxu0 0.0
    %1605 = vmatpush.msra.mxu0 0.0
    %1606 = vmatpush.msra.mxu0 0.0
    %1607 = vmatpush.msra.mxu0 0.0
    %1608 = vmatpush.msra.mxu0 0.0
    %1609 = vmatpush.msra.mxu0 0.0
    %1610 = vmatpush.msra.mxu0 0.0
    %1611 = vmatpush.msra.mxu0 0.0
    %1612 = vmatpush.msra.mxu0 0.0
    %1613 = vmatpush.msra.mxu0 0.0
    %1614 = vmatpush.msra.mxu0 0.0
    %1615 = vmatpush.msra.mxu0 %v1563
    %1616 = vmatmul.f32.gmra.mxu0 %v1553
    %v1617 = vpop.f32.mrf.mxu0
    %v1618 = vadd.f32 0.0, %v1617
    %1619 = vmatmul.f32.gmra.mxu0 %v1556
    %v1620 = vpop.f32.mrf.mxu0
    %v1621 = vadd.f32 0.0, %v1620
    %1622 = vdwg.mxu0
    %1623 = vmatpush.msra.mxu0 0.0
    %1624 = vmatpush.msra.mxu0 0.0
    %1625 = vmatpush.msra.mxu0 0.0
    %1626 = vmatpush.msra.mxu0 0.0
    %1627 = vmatpush.msra.mxu0 0.0
    %1628 = vmatpush.msra.mxu0 0.0
    %1629 = vmatpush.msra.mxu0 0.0
    %1630 = vmatpush.msra.mxu0 0.0
    %1631 = vmatpush.msra.mxu0 0.0
    %1632 = vmatpush.msra.mxu0 0.0
    %1633 = vmatpush.msra.mxu0 0.0
    %1634 = vmatpush.msra.mxu0 0.0
    %1635 = vmatpush.msra.mxu0 0.0
    %1636 = vmatpush.msra.mxu0 0.0
    %1637 = vmatpush.msra.mxu0 0.0
    %1638 = vmatpush.msra.mxu0 %v1566
    %1639 = vmatmul.f32.gmra.mxu0 %v1553
    %v1640 = vpop.f32.mrf.mxu0
    %v1641 = vadd.f32 0.0, %v1640
    %1642 = vmatmul.f32.gmra.mxu0 %v1556
    %v1643 = vpop.f32.mrf.mxu0
    %v1644 = vadd.f32 0.0, %v1643
    %1645 = vdwg.mxu0
    %1646 = vmatpush.msra.mxu0 0.0
    %1647 = vmatpush.msra.mxu0 0.0
    %1648 = vmatpush.msra.mxu0 0.0
    %1649 = vmatpush.msra.mxu0 0.0
    %1650 = vmatpush.msra.mxu0 0.0
    %1651 = vmatpush.msra.mxu0 0.0
    %1652 = vmatpush.msra.mxu0 0.0
    %1653 = vmatpush.msra.mxu0 0.0
    %1654 = vmatpush.msra.mxu0 0.0
    %1655 = vmatpush.msra.mxu0 0.0
    %1656 = vmatpush.msra.mxu0 0.0
    %1657 = vmatpush.msra.mxu0 0.0
    %1658 = vmatpush.msra.mxu0 0.0
    %1659 = vmatpush.msra.mxu0 0.0
    %1660 = vmatpush.msra.mxu0 0.0
    %1661 = vmatpush.msra.mxu0 %v1569
    %1662 = vmatmul.f32.gmra.mxu0 %v1553
    %v1663 = vpop.f32.mrf.mxu0
    %v1664 = vadd.f32 0.0, %v1663
    %1665 = vmatmul.f32.gmra.mxu0 %v1556
    %v1666 = vpop.f32.mrf.mxu0
    %v1667 = vadd.f32 0.0, %v1666
    %1668 = vdwg.mxu0
    %1669 = vmatpush.msra.mxu0 0.0
    %1670 = vmatpush.msra.mxu0 0.0
    %1671 = vmatpush.msra.mxu0 0.0
    %1672 = vmatpush.msra.mxu0 0.0
    %1673 = vmatpush.msra.mxu0 0.0
    %1674 = vmatpush.msra.mxu0 0.0
    %1675 = vmatpush.msra.mxu0 0.0
    %1676 = vmatpush.msra.mxu0 0.0
    %1677 = vmatpush.msra.mxu0 0.0
    %1678 = vmatpush.msra.mxu0 0.0
    %1679 = vmatpush.msra.mxu0 0.0
    %1680 = vmatpush.msra.mxu0 0.0
    %1681 = vmatpush.msra.mxu0 0.0
    %1682 = vmatpush.msra.mxu0 0.0
    %1683 = vmatpush.msra.mxu0 0.0
    %1684 = vmatpush.msra.mxu0 %v1572
    %1685 = vmatmul.f32.gmra.mxu0 %v1553
    %v1686 = vpop.f32.mrf.mxu0
    %v1687 = vadd.f32 0.0, %v1686
    %1688 = vmatmul.f32.gmra.mxu0 %v1556
    %v1689 = vpop.f32.mrf.mxu0
    %v1690 = vadd.f32 0.0, %v1689
    %1691 = vdwg.mxu0
    %1692 = vmatpush.msra.mxu0 0.0
    %1693 = vmatpush.msra.mxu0 0.0
    %1694 = vmatpush.msra.mxu0 0.0
    %1695 = vmatpush.msra.mxu0 0.0
    %1696 = vmatpush.msra.mxu0 0.0
    %1697 = vmatpush.msra.mxu0 0.0
    %1698 = vmatpush.msra.mxu0 0.0
    %1699 = vmatpush.msra.mxu0 0.0
    %1700 = vmatpush.msra.mxu0 0.0
    %1701 = vmatpush.msra.mxu0 0.0
    %1702 = vmatpush.msra.mxu0 0.0
    %1703 = vmatpush.msra.mxu0 0.0
    %1704 = vmatpush.msra.mxu0 0.0
    %1705 = vmatpush.msra.mxu0 0.0
    %1706 = vmatpush.msra.mxu0 0.0
    %1707 = vmatpush.msra.mxu0 %v1575
    %1708 = vmatmul.f32.gmra.mxu0 %v1553
    %v1709 = vpop.f32.mrf.mxu0
    %v1710 = vadd.f32 0.0, %v1709
    %1711 = vmatmul.f32.gmra.mxu0 %v1556
    %v1712 = vpop.f32.mrf.mxu0
    %v1713 = vadd.f32 0.0, %v1712
    %1714 = vdwg.mxu0
    %v1715 = vmul.f32 %v1539, %v1595
    %v1716 = vmul.f32 %v1540, %v1618
    %v1717 = vmul.f32 %v1541, %v1641
    %v1718 = vmul.f32 %v1542, %v1664
    %v1719 = vmul.f32 %v1543, %v1687
    %v1720 = vmul.f32 %v1544, %v1710
    %v1721 = vmul.f32 %v1545, %v1598
    %v1722 = vmul.f32 %v1546, %v1621
    %v1723 = vmul.f32 %v1547, %v1644
    %v1724 = vmul.f32 %v1548, %v1667
    %v1725 = vmul.f32 %v1549, %v1690
    %v1726 = vmul.f32 %v1550, %v1713
    %v1727 = vsel %vm1551, %v1271, 0.0
    %v1728 = vsel %vm1551, %v1272, 0.0
    %v1729 = vld [vmem:[%s2] sm:$0xf]
    %v1730 = vld [vmem:[%s2 + $0x4] sm:$0xf]
    %v1731 = vld [vmem:[%s2 + $0x8] sm:$0xf]
    %v1732 = vld [vmem:[%s2 + $0xc] sm:$0xf]
    %v1733 = vld [vmem:[%s2 + $0x10] sm:$0xf]
    %v1734 = vld [vmem:[%s2 + $0x14] sm:$0xf]
    %v1735 = vld [vmem:[%s2 + $0x18] sm:$0xf]
    %v1736 = vld [vmem:[%s2 + $0x1c] sm:$0xf]
    %v1737 = vld [vmem:[%s2 + $0x20] sm:$0xf]
    %v1738 = vld [vmem:[%s2 + $0x24] sm:$0xf]
    %v1739 = vld [vmem:[%s2 + $0x28] sm:$0xf]
    %v1740 = vld [vmem:[%s2 + $0x2c] sm:$0xf]
    %v1741 = vld [vmem:[%s2 + $0x30] sm:$0xf]
    %v1742 = vld [vmem:[%s2 + $0x34] sm:$0xf]
    %v1743 = vld [vmem:[%s2 + $0x38] sm:$0xf]
    %v1744 = vld [vmem:[%s2 + $0x3c] sm:$0xf]
    %v1745 = vld [vmem:[%s2 + $0x40] sm:$0xf]
    %v1746 = vld [vmem:[%s2 + $0x44] sm:$0xf]
    %v1747 = vld [vmem:[%s2 + $0x48] sm:$0xf]
    %v1748 = vld [vmem:[%s2 + $0x4c] sm:$0xf]
    %v1749 = vld [vmem:[%s2 + $0x50] sm:$0xf]
    %v1750 = vld [vmem:[%s2 + $0x54] sm:$0xf]
    %v1751 = vld [vmem:[%s2 + $0x58] sm:$0xf]
    %v1752 = vld [vmem:[%s2 + $0x5c] sm:$0xf]
    %v1753 = vld [vmem:[%s2 + $0x60] sm:$0xf]
    %v1754 = vld [vmem:[%s2 + $0x64] sm:$0xf]
    %v1755 = vld [vmem:[%s2 + $0x68] sm:$0xf]
    %v1756 = vld [vmem:[%s2 + $0x6c] sm:$0xf]
    %v1757 = vld [vmem:[%s2 + $0x70] sm:$0xf]
    %v1758 = vld [vmem:[%s2 + $0x74] sm:$0xf]
    %v1759 = vld [vmem:[%s2 + $0x78] sm:$0xf]
    %v1760 = vld [vmem:[%s2 + $0x7c] sm:$0xf]
    %v1761 = vld [vmem:[%s2 + $0x80] sm:$0xf]
    %v1762 = vld [vmem:[%s2 + $0x84] sm:$0xf]
    %v1763 = vld [vmem:[%s2 + $0x88] sm:$0xf]
    %v1764 = vld [vmem:[%s2 + $0x8c] sm:$0xf]
    %v1765 = vld [vmem:[%s2 + $0x90] sm:$0xf]
    %v1766 = vld [vmem:[%s2 + $0x94] sm:$0xf]
    %v1767 = vld [vmem:[%s2 + $0x98] sm:$0xf]
    %v1768 = vld [vmem:[%s2 + $0x9c] sm:$0xf]
    %v1769 = vld [vmem:[%s2 + $0xa0] sm:$0xf]
    %v1770 = vld [vmem:[%s2 + $0xa4] sm:$0xf]
    %v1771 = vld [vmem:[%s2 + $0xa8] sm:$0xf]
    %v1772 = vld [vmem:[%s2 + $0xac] sm:$0xf]
    %v1773 = vld [vmem:[%s2 + $0xb0] sm:$0xf]
    %v1774 = vld [vmem:[%s2 + $0xb4] sm:$0xf]
    %v1775 = vld [vmem:[%s2 + $0xb8] sm:$0xf]
    %v1776 = vld [vmem:[%s2 + $0xbc] sm:$0xf]
    %v1777 = vld [vmem:[%s2 + $0xc0] sm:$0xf]
    %v1778 = vld [vmem:[%s2 + $0xc4] sm:$0xf]
    %v1779 = vld [vmem:[%s2 + $0xc8] sm:$0xf]
    %v1780 = vld [vmem:[%s2 + $0xcc] sm:$0xf]
    %v1781 = vld [vmem:[%s2 + $0xd0] sm:$0xf]
    %v1782 = vld [vmem:[%s2 + $0xd4] sm:$0xf]
    %v1783 = vld [vmem:[%s2 + $0xd8] sm:$0xf]
    %v1784 = vld [vmem:[%s2 + $0xdc] sm:$0xf]
    %v1785 = vld [vmem:[%s2 + $0xe0] sm:$0xf]
    %v1786 = vld [vmem:[%s2 + $0xe4] sm:$0xf]
    %v1787 = vld [vmem:[%s2 + $0xe8] sm:$0xf]
    %v1788 = vld [vmem:[%s2 + $0xec] sm:$0xf]
    %v1789 = vld [vmem:[%s2 + $0xf0] sm:$0xf]
    %v1790 = vld [vmem:[%s2 + $0xf4] sm:$0xf]
    %v1791 = vld [vmem:[%s2 + $0xf8] sm:$0xf]
    %v1792 = vld [vmem:[%s2 + $0xfc] sm:$0xf]
    %v1793 = vld [vmem:[%s2 + $0x100] sm:$0xf]
    %v1794 = vld [vmem:[%s2 + $0x104] sm:$0xf]
    %v1795 = vld [vmem:[%s2 + $0x108] sm:$0xf]
    %v1796 = vld [vmem:[%s2 + $0x10c] sm:$0xf]
    %v1797 = vld [vmem:[%s2 + $0x110] sm:$0xf]
    %v1798 = vld [vmem:[%s2 + $0x114] sm:$0xf]
    %v1799 = vld [vmem:[%s2 + $0x118] sm:$0xf]
    %v1800 = vld [vmem:[%s2 + $0x11c] sm:$0xf]
    %v1801 = vld [vmem:[%s2 + $0x120] sm:$0xf]
    %v1802 = vld [vmem:[%s2 + $0x124] sm:$0xf]
    %v1803 = vld [vmem:[%s2 + $0x128] sm:$0xf]
    %v1804 = vld [vmem:[%s2 + $0x12c] sm:$0xf]
    %v1805 = vld [vmem:[%s2 + $0x130] sm:$0xf]
    %v1806 = vld [vmem:[%s2 + $0x134] sm:$0xf]
    %v1807 = vld [vmem:[%s2 + $0x138] sm:$0xf]
    %v1808 = vld [vmem:[%s2 + $0x13c] sm:$0xf]
    %v1809 = vld [vmem:[%s2 + $0x140] sm:$0xf]
    %v1810 = vld [vmem:[%s2 + $0x144] sm:$0xf]
    %v1811 = vld [vmem:[%s2 + $0x148] sm:$0xf]
    %v1812 = vld [vmem:[%s2 + $0x14c] sm:$0xf]
    %v1813 = vld [vmem:[%s2 + $0x150] sm:$0xf]
    %v1814 = vld [vmem:[%s2 + $0x154] sm:$0xf]
    %v1815 = vld [vmem:[%s2 + $0x158] sm:$0xf]
    %v1816 = vld [vmem:[%s2 + $0x15c] sm:$0xf]
    %v1817 = vld [vmem:[%s2 + $0x160] sm:$0xf]
    %v1818 = vld [vmem:[%s2 + $0x164] sm:$0xf]
    %v1819 = vld [vmem:[%s2 + $0x168] sm:$0xf]
    %v1820 = vld [vmem:[%s2 + $0x16c] sm:$0xf]
    %v1821 = vld [vmem:[%s2 + $0x170] sm:$0xf]
    %v1822 = vld [vmem:[%s2 + $0x174] sm:$0xf]
    %v1823 = vld [vmem:[%s2 + $0x178] sm:$0xf]
    %v1824 = vld [vmem:[%s2 + $0x17c] sm:$0xf]
    %v1825 = vld [vmem:[%s2 + $0x180] sm:$0xf]
    %v1826 = vld [vmem:[%s2 + $0x184] sm:$0xf]
    %v1827 = vpack.c.bf16 %v1721, %v1715
    %v1828 = vpack.c.bf16 %v1722, %v1716
    %v1829 = vpack.c.bf16 %v1723, %v1717
    %v1830 = vpack.c.bf16 %v1724, %v1718
    %v1831 = vpack.c.bf16 %v1725, %v1719
    %v1832 = vpack.c.bf16 %v1726, %v1720
    %v1833 = vpack.c.bf16 %v1728, %v1727
    %v1932 = vunpack.c.l.b16 %v1729
    %v1933 = vunpack.c.l.b16 %v1730
    %v1934 = vunpack.c.l.b16 %v1731
    %v1935 = vunpack.c.l.b16 %v1732
    %v1936 = vunpack.c.l.b16 %v1733
    %v1937 = vunpack.c.l.b16 %v1734
    %v1938 = vunpack.c.l.b16 %v1735
    %v1939 = vunpack.c.l.b16 %v1736
    %v1940 = vunpack.c.l.b16 %v1737
    %v1941 = vunpack.c.l.b16 %v1738
    %v1942 = vunpack.c.l.b16 %v1739
    %v1943 = vunpack.c.l.b16 %v1740
    %v1944 = vunpack.c.l.b16 %v1741
    %v1945 = vunpack.c.l.b16 %v1742
    %v1946 = vunpack.c.l.b16 %v1743
    %v1947 = vunpack.c.l.b16 %v1744
    %v1948 = vunpack.c.l.b16 %v1745
    %v1949 = vunpack.c.l.b16 %v1746
    %v1950 = vunpack.c.l.b16 %v1747
    %v1951 = vunpack.c.l.b16 %v1748
    %v1952 = vunpack.c.l.b16 %v1749
    %v1953 = vunpack.c.l.b16 %v1750
    %v1954 = vunpack.c.l.b16 %v1751
    %v1955 = vunpack.c.l.b16 %v1752
    %v1956 = vunpack.c.l.b16 %v1753
    %v1957 = vunpack.c.l.b16 %v1754
    %v1958 = vunpack.c.l.b16 %v1755
    %v1959 = vunpack.c.l.b16 %v1756
    %v1960 = vunpack.c.l.b16 %v1757
    %v1961 = vunpack.c.l.b16 %v1758
    %v1962 = vunpack.c.l.b16 %v1759
    %v1963 = vunpack.c.l.b16 %v1760
    %v1964 = vunpack.c.l.b16 %v1761
    %v1965 = vunpack.c.l.b16 %v1762
    %v1966 = vunpack.c.l.b16 %v1763
    %v1967 = vunpack.c.l.b16 %v1764
    %v1968 = vunpack.c.l.b16 %v1765
    %v1969 = vunpack.c.l.b16 %v1766
    %v1970 = vunpack.c.l.b16 %v1767
    %v1971 = vunpack.c.l.b16 %v1768
    %v1972 = vunpack.c.l.b16 %v1769
    %v1973 = vunpack.c.l.b16 %v1770
    %v1974 = vunpack.c.l.b16 %v1771
    %v1975 = vunpack.c.l.b16 %v1772
    %v1976 = vunpack.c.l.b16 %v1773
    %v1977 = vunpack.c.l.b16 %v1774
    %v1978 = vunpack.c.l.b16 %v1775
    %v1979 = vunpack.c.l.b16 %v1776
    %v1980 = vunpack.c.l.b16 %v1777
    %v1981 = vunpack.c.l.b16 %v1778
    %v1982 = vunpack.c.l.b16 %v1779
    %v1983 = vunpack.c.l.b16 %v1780
    %v1984 = vunpack.c.l.b16 %v1781
    %v1985 = vunpack.c.l.b16 %v1782
    %v1986 = vunpack.c.l.b16 %v1783
    %v1987 = vunpack.c.l.b16 %v1784
    %v1988 = vunpack.c.l.b16 %v1785
    %v1989 = vunpack.c.l.b16 %v1786
    %v1990 = vunpack.c.l.b16 %v1787
    %v1991 = vunpack.c.l.b16 %v1788
    %v1992 = vunpack.c.l.b16 %v1789
    %v1993 = vunpack.c.l.b16 %v1790
    %v1994 = vunpack.c.l.b16 %v1791
    %v1995 = vunpack.c.l.b16 %v1792
    %v1996 = vunpack.c.l.b16 %v1793
    %v1997 = vunpack.c.l.b16 %v1794
    %v1998 = vunpack.c.l.b16 %v1795
    %v1999 = vunpack.c.l.b16 %v1796
    %v2000 = vunpack.c.l.b16 %v1797
    %v2001 = vunpack.c.l.b16 %v1798
    %v2002 = vunpack.c.l.b16 %v1799
    %v2003 = vunpack.c.l.b16 %v1800
    %v2004 = vunpack.c.l.b16 %v1801
    %v2005 = vunpack.c.l.b16 %v1802
    %v2006 = vunpack.c.l.b16 %v1803
    %v2007 = vunpack.c.l.b16 %v1804
    %v2008 = vunpack.c.l.b16 %v1805
    %v2009 = vunpack.c.l.b16 %v1806
    %v2010 = vunpack.c.l.b16 %v1807
    %v2011 = vunpack.c.l.b16 %v1808
    %v2012 = vunpack.c.l.b16 %v1809
    %v2013 = vunpack.c.l.b16 %v1810
    %v2014 = vunpack.c.l.b16 %v1811
    %v2015 = vunpack.c.l.b16 %v1812
    %v2016 = vunpack.c.l.b16 %v1813
    %v2017 = vunpack.c.l.b16 %v1814
    %v2018 = vunpack.c.l.b16 %v1815
    %v2019 = vunpack.c.l.b16 %v1816
    %v2020 = vunpack.c.l.b16 %v1817
    %v2021 = vunpack.c.l.b16 %v1818
    %v2022 = vunpack.c.l.b16 %v1819
    %v2023 = vunpack.c.l.b16 %v1820
    %v2024 = vunpack.c.l.b16 %v1821
    %v2025 = vunpack.c.l.b16 %v1822
    %v2026 = vunpack.c.l.b16 %v1823
    %v2027 = vunpack.c.l.b16 %v1824
    %v2028 = vunpack.c.l.b16 %v1825
    %v2029 = vunpack.c.l.b16 %v1826
    %v2030 = vpack.c.b16 %v1933, %v1932
    %v2031 = vpack.c.b16 %v1935, %v1934
    %v2032 = vpack.c.b16 %v1937, %v1936
    %v2033 = vpack.c.b16 %v1939, %v1938
    %v2034 = vpack.c.b16 %v1941, %v1940
    %v2035 = vpack.c.b16 %v1943, %v1942
    %v2036 = vpack.c.b16 %v1945, %v1944
    %v2037 = vpack.c.b16 %v1947, %v1946
    %v2038 = vpack.c.b16 %v1949, %v1948
    %v2039 = vpack.c.b16 %v1951, %v1950
    %v2040 = vpack.c.b16 %v1953, %v1952
    %v2041 = vpack.c.b16 %v1955, %v1954
    %v2042 = vpack.c.b16 %v1957, %v1956
    %v2043 = vpack.c.b16 %v1959, %v1958
    %v2044 = vpack.c.b16 %v1961, %v1960
    %v2045 = vpack.c.b16 %v1963, %v1962
    %v2046 = vpack.c.b16 %v1965, %v1964
    %v2047 = vpack.c.b16 %v1967, %v1966
    %v2048 = vpack.c.b16 %v1969, %v1968
    %v2049 = vpack.c.b16 %v1971, %v1970
    %v2050 = vpack.c.b16 %v1973, %v1972
    %v2051 = vpack.c.b16 %v1975, %v1974
    %v2052 = vpack.c.b16 %v1977, %v1976
    %v2053 = vpack.c.b16 %v1979, %v1978
    %v2054 = vpack.c.b16 %v1981, %v1980
    %v2055 = vpack.c.b16 %v1983, %v1982
    %v2056 = vpack.c.b16 %v1985, %v1984
    %v2057 = vpack.c.b16 %v1987, %v1986
    %v2058 = vpack.c.b16 %v1989, %v1988
    %v2059 = vpack.c.b16 %v1991, %v1990
    %v2060 = vpack.c.b16 %v1993, %v1992
    %v2061 = vpack.c.b16 %v1995, %v1994
    %v2062 = vpack.c.b16 %v1997, %v1996
    %v2063 = vpack.c.b16 %v1999, %v1998
    %v2064 = vpack.c.b16 %v2001, %v2000
    %v2065 = vpack.c.b16 %v2003, %v2002
    %v2066 = vpack.c.b16 %v2005, %v2004
    %v2067 = vpack.c.b16 %v2007, %v2006
    %v2068 = vpack.c.b16 %v2009, %v2008
    %v2069 = vpack.c.b16 %v2011, %v2010
    %v2070 = vpack.c.b16 %v2013, %v2012
    %v2071 = vpack.c.b16 %v2015, %v2014
    %v2072 = vpack.c.b16 %v2017, %v2016
    %v2073 = vpack.c.b16 %v2019, %v2018
    %v2074 = vpack.c.b16 %v2021, %v2020
    %v2075 = vpack.c.b16 %v2023, %v2022
    %v2076 = vpack.c.b16 %v2025, %v2024
    %v2077 = vpack.c.b16 %v2027, %v2026
    %v2078 = vpack.c.b16 %v2029, %v2028
    %v2129 = vsel %vm152, %v1833, 0
    %2131 = vmatpush.bf16.msra.mxu0 %v2037
    %2132 = vmatpush.bf16.msra.mxu0 %v2036
    %2133 = vmatpush.bf16.msra.mxu0 %v2035
    %2134 = vmatpush.bf16.msra.mxu0 %v2034
    %2135 = vmatpush.bf16.msra.mxu0 %v2033
    %2136 = vmatpush.bf16.msra.mxu0 %v2032
    %2137 = vmatpush.bf16.msra.mxu0 %v2031
    %2138 = vmatpush.bf16.msra.mxu0 %v2030
    %2139 = vmatmul.bf16.gmra.mxu0 %v1827
    %v2140 = vpop.f32.mrf.mxu0
    %v2141 = vadd.f32 0.0, %v2140
    %v2142 = vpop.f32.mrf.mxu0
    %v2143 = vadd.f32 0.0, %v2142
    %2144 = vdwg.mxu0
    %2145 = vmatpush.bf16.msra.mxu0 %v2045
    %2146 = vmatpush.bf16.msra.mxu0 %v2044
    %2147 = vmatpush.bf16.msra.mxu0 %v2043
    %2148 = vmatpush.bf16.msra.mxu0 %v2042
    %2149 = vmatpush.bf16.msra.mxu0 %v2041
    %2150 = vmatpush.bf16.msra.mxu0 %v2040
    %2151 = vmatpush.bf16.msra.mxu0 %v2039
    %2152 = vmatpush.bf16.msra.mxu0 %v2038
    %2153 = vmatmul.bf16.gmra.mxu0 %v1828
    %v2154 = vpop.f32.mrf.mxu0
    %v2155 = vadd.f32 %v2141, %v2154
    %v2156 = vpop.f32.mrf.mxu0
    %v2157 = vadd.f32 %v2143, %v2156
    %2158 = vdwg.mxu0
    %2159 = vmatpush.bf16.msra.mxu0 %v2053
    %2160 = vmatpush.bf16.msra.mxu0 %v2052
    %2161 = vmatpush.bf16.msra.mxu0 %v2051
    %2162 = vmatpush.bf16.msra.mxu0 %v2050
    %2163 = vmatpush.bf16.msra.mxu0 %v2049
    %2164 = vmatpush.bf16.msra.mxu0 %v2048
    %2165 = vmatpush.bf16.msra.mxu0 %v2047
    %2166 = vmatpush.bf16.msra.mxu0 %v2046
    %2167 = vmatmul.bf16.gmra.mxu0 %v1829
    %v2168 = vpop.f32.mrf.mxu0
    %v2169 = vadd.f32 %v2155, %v2168
    %v2170 = vpop.f32.mrf.mxu0
    %v2171 = vadd.f32 %v2157, %v2170
    %2172 = vdwg.mxu0
    %2173 = vmatpush.bf16.msra.mxu0 %v2061
    %2174 = vmatpush.bf16.msra.mxu0 %v2060
    %2175 = vmatpush.bf16.msra.mxu0 %v2059
    %2176 = vmatpush.bf16.msra.mxu0 %v2058
    %2177 = vmatpush.bf16.msra.mxu0 %v2057
    %2178 = vmatpush.bf16.msra.mxu0 %v2056
    %2179 = vmatpush.bf16.msra.mxu0 %v2055
    %2180 = vmatpush.bf16.msra.mxu0 %v2054
    %2181 = vmatmul.bf16.gmra.mxu0 %v1830
    %v2182 = vpop.f32.mrf.mxu0
    %v2183 = vadd.f32 %v2169, %v2182
    %v2184 = vpop.f32.mrf.mxu0
    %v2185 = vadd.f32 %v2171, %v2184
    %2186 = vdwg.mxu0
    %2187 = vmatpush.bf16.msra.mxu0 %v2069
    %2188 = vmatpush.bf16.msra.mxu0 %v2068
    %2189 = vmatpush.bf16.msra.mxu0 %v2067
    %2190 = vmatpush.bf16.msra.mxu0 %v2066
    %2191 = vmatpush.bf16.msra.mxu0 %v2065
    %2192 = vmatpush.bf16.msra.mxu0 %v2064
    %2193 = vmatpush.bf16.msra.mxu0 %v2063
    %2194 = vmatpush.bf16.msra.mxu0 %v2062
    %2195 = vmatmul.bf16.gmra.mxu0 %v1831
    %v2196 = vpop.f32.mrf.mxu0
    %v2197 = vadd.f32 %v2183, %v2196
    %v2198 = vpop.f32.mrf.mxu0
    %v2199 = vadd.f32 %v2185, %v2198
    %2200 = vdwg.mxu0
    %2201 = vmatpush.bf16.msra.mxu0 %v2077
    %2202 = vmatpush.bf16.msra.mxu0 %v2076
    %2203 = vmatpush.bf16.msra.mxu0 %v2075
    %2204 = vmatpush.bf16.msra.mxu0 %v2074
    %2205 = vmatpush.bf16.msra.mxu0 %v2073
    %2206 = vmatpush.bf16.msra.mxu0 %v2072
    %2207 = vmatpush.bf16.msra.mxu0 %v2071
    %2208 = vmatpush.bf16.msra.mxu0 %v2070
    %2209 = vmatmul.bf16.gmra.mxu0 %v1832
    %v2210 = vpop.f32.mrf.mxu0
    %v2211 = vadd.f32 %v2197, %v2210
    %v2212 = vpop.f32.mrf.mxu0
    %v2213 = vadd.f32 %v2199, %v2212
    %2214 = vdwg.mxu0
    %2215 = vmatpush.bf16.msra.mxu0 0
    %2216 = vmatpush.bf16.msra.mxu0 0
    %2217 = vmatpush.bf16.msra.mxu0 0
    %2218 = vmatpush.bf16.msra.mxu0 0
    %2219 = vmatpush.bf16.msra.mxu0 0
    %2220 = vmatpush.bf16.msra.mxu0 0
    %2221 = vmatpush.bf16.msra.mxu0 0
    %2222 = vmatpush.bf16.msra.mxu0 %v2078
    %2223 = vmatmul.bf16.gmra.mxu0 %v2129
    %v2224 = vpop.f32.mrf.mxu0
    %v2225 = vadd.f32 %v2211, %v2224
    %v2226 = vpop.f32.mrf.mxu0
    %v2227 = vadd.f32 %v2213, %v2226
    %2228 = vdwg.mxu0
    %v2229 = vadd.f32 %v988, %v2225
    %v2230 = vadd.f32 %v989, %v2227
    %v2231 = vsel %vm58, %v2229, 0.0
    %2232 = vadd.xlane.f32.xlu0 %v2231
    %v2233 = vpop.xlane.xlu0 %2232
    %v2234 = vsel %vm58, %v2230, 0.0
    %2235 = vadd.xlane.f32.xlu0 %v2234
    %v2236 = vpop.xlane.xlu0 %2235
    %v2237 = vmul.f32 %v2233, %v71
    %v2238 = vmul.f32 %v2236, %v71
    %v2239 = vsub.f32 %v2229, %v2237
    %v2240 = vsub.f32 %v2230, %v2238
    %v2241 = vmul.f32 %v2239, %v2239
    %v2242 = vmul.f32 %v2240, %v2240
    %v2243 = vsel %vm58, %v2241, 0.0
    %2244 = vadd.xlane.f32.xlu0 %v2243
    %v2245 = vpop.xlane.xlu0 %2244
    %v2246 = vsel %vm58, %v2242, 0.0
    %2247 = vadd.xlane.f32.xlu0 %v2246
    %v2248 = vpop.xlane.xlu0 %2247
    %v2249 = vmul.f32 %v2245, %v71
    %v2250 = vmul.f32 %v2248, %v71
    %v2251 = vadd.f32 %v2249, 1e-05
    %v2252 = vadd.f32 %v2250, 1e-05
    %v2253 = vrsqrt.pop %v2251
    %v2254 = vmul.f32 %v2253, %v2251
    %v2255 = vmul.f32 %v2254, %v2253
    %v2256 = vmul.f32 0.5, %v2255
    %v2257 = vsub.f32 1.5, %v2256
    %v2258 = vmul.f32 %v2253, %v2257
    %vm2259 = vweird.f32 %v2251
    %vm2260 = vweird.f32 %v2253
    %vm2261 = vmor %vm2259, %vm2260
    %v2262 = vsel %vm2261, %v2253, %v2258
    %v2263 = vrsqrt.pop %v2252
    %v2264 = vmul.f32 %v2263, %v2252
    %v2265 = vmul.f32 %v2264, %v2263
    %v2266 = vmul.f32 0.5, %v2265
    %v2267 = vsub.f32 1.5, %v2266
    %v2268 = vmul.f32 %v2263, %v2267
    %vm2269 = vweird.f32 %v2252
    %vm2270 = vweird.f32 %v2263
    %vm2271 = vmor %vm2269, %vm2270
    %v2272 = vsel %vm2271, %v2263, %v2268
    %v2273 = vmul.f32 %v2239, %v2262
    %v2274 = vmul.f32 %v2240, %v2272
    %v2275 = vmul.f32 %v2273, %v1034
    %v2276 = vmul.f32 %v2274, %v1034
    %v2277 = vadd.f32 %v2275, %v1037
    %v2278 = vadd.f32 %v2276, %v1037
    %v2279 = vld [vmem:[%s1 + $0x18] sm:$0xf]
    %v2280 = vld [vmem:[%s1 + $0x3c] sm:$0xf]
    %v2281 = vld [vmem:[%s1 + $0x60] sm:$0xf]
    %v2282 = vld [vmem:[%s1 + $0x84] sm:$0xf]
    %v2283 = vpack.c.bf16 %v2278, %v2277
    %v2284 = vld [vmem:[%s3 + $0xc] sm:$0x1]
    %v2285 = vperm.slane %v2284, 0
    %v2290 = vunpack.c.l.b16 %v2279
    %v2291 = vunpack.c.l.b16 %v2280
    %v2292 = vunpack.c.l.b16 %v2281
    %v2293 = vunpack.c.l.b16 %v2282
    %v2294 = vpack.c.b16 %v2291, %v2290
    %v2295 = vpack.c.b16 %v2293, %v2292
    %v2299 = vsel %vm58, %v2283, 0
    %2301 = vmatpush.bf16.msra.mxu0 0
    %2302 = vmatpush.bf16.msra.mxu0 0
    %2303 = vmatpush.bf16.msra.mxu0 0
    %2304 = vmatpush.bf16.msra.mxu0 0
    %2305 = vmatpush.bf16.msra.mxu0 0
    %2306 = vmatpush.bf16.msra.mxu0 0
    %2307 = vmatpush.bf16.msra.mxu0 %v2295
    %2308 = vmatpush.bf16.msra.mxu0 %v2294
    %2309 = vmatmul.bf16.gmra.mxu0 %v2299
    %v2310 = vpop.f32.mrf.mxu0
    %v2311 = vadd.f32 %v2285, %v2310
    %v2312 = vpop.f32.mrf.mxu0
    %v2313 = vadd.f32 %v2285, %v2312
    %2314 = vdwg.mxu0
    %v2315 = vmul.f32 %v2311, %v2311
    %v2316 = vmul.f32 %v2313, %v2313
    %v2317 = vmul.f32 %v2311, %v2315
    %v2318 = vmul.f32 %v2313, %v2316
    %v2319 = vmul.f32 %v2317, 0.044715
    %v2320 = vmul.f32 %v2318, 0.044715
    %v2321 = vadd.f32 %v2311, %v2319
    %v2322 = vadd.f32 %v2313, %v2320
    %v2323 = vmul.f32 %v2321, 0.7978846
    %v2324 = vmul.f32 %v2322, 0.7978846
    %v2325 = vtanh.pop %v2323
    %v2326 = vtanh.pop %v2324
    %v2327 = vadd.f32 %v2325, 1.0
    %v2328 = vadd.f32 %v2326, 1.0
    %v2329 = vmul.f32 %v2327, 0.5
    %v2330 = vmul.f32 %v2328, 0.5
    %v2331 = vmul.f32 %v2311, %v2329
    %v2332 = vmul.f32 %v2313, %v2330
    %v2333 = vld [vmem:[%s2 + $0x188] sm:$0xf]
    %v2334 = vld [vmem:[%s2 + $0x18c] sm:$0xf]
    %v2335 = vld [vmem:[%s2 + $0x190] sm:$0xf]
    %v2336 = vld [vmem:[%s2 + $0x194] sm:$0xf]
    %v2337 = vld [vmem:[%s2 + $0x198] sm:$0xf]
    %v2338 = vld [vmem:[%s2 + $0x19c] sm:$0xf]
    %v2339 = vld [vmem:[%s2 + $0x1a0] sm:$0xf]
    %v2340 = vld [vmem:[%s2 + $0x1a4] sm:$0xf]
    %v2341 = vld [vmem:[%s2 + $0x1a8] sm:$0xf]
    %v2342 = vld [vmem:[%s2 + $0x1ac] sm:$0xf]
    %v2343 = vld [vmem:[%s2 + $0x1b0] sm:$0xf]
    %v2344 = vld [vmem:[%s2 + $0x1b4] sm:$0xf]
    %v2345 = vld [vmem:[%s2 + $0x1b8] sm:$0xf]
    %v2346 = vld [vmem:[%s2 + $0x1bc] sm:$0xf]
    %v2347 = vld [vmem:[%s2 + $0x1c0] sm:$0xf]
    %v2348 = vld [vmem:[%s2 + $0x1c4] sm:$0xf]
    %v2349 = vpack.c.bf16 %v2332, %v2331
    %v2350 = vld [vmem:[%s3 + $0x1] sm:$0x1]
    %v2351 = vperm.slane %v2350, 0
    %v2368 = vunpack.c.l.b16 %v2333
    %v2369 = vunpack.c.l.b16 %v2334
    %v2370 = vunpack.c.l.b16 %v2335
    %v2371 = vunpack.c.l.b16 %v2336
    %v2372 = vunpack.c.l.b16 %v2337
    %v2373 = vunpack.c.l.b16 %v2338
    %v2374 = vunpack.c.l.b16 %v2339
    %v2375 = vunpack.c.l.b16 %v2340
    %v2376 = vunpack.c.l.b16 %v2341
    %v2377 = vunpack.c.l.b16 %v2342
    %v2378 = vunpack.c.l.b16 %v2343
    %v2379 = vunpack.c.l.b16 %v2344
    %v2380 = vunpack.c.l.b16 %v2345
    %v2381 = vunpack.c.l.b16 %v2346
    %v2382 = vunpack.c.l.b16 %v2347
    %v2383 = vunpack.c.l.b16 %v2348
    %v2384 = vpack.c.b16 %v2369, %v2368
    %v2385 = vpack.c.b16 %v2371, %v2370
    %v2386 = vpack.c.b16 %v2373, %v2372
    %v2387 = vpack.c.b16 %v2375, %v2374
    %v2388 = vpack.c.b16 %v2377, %v2376
    %v2389 = vpack.c.b16 %v2379, %v2378
    %v2390 = vpack.c.b16 %v2381, %v2380
    %v2391 = vpack.c.b16 %v2383, %v2382
    %2400 = vmatpush.bf16.msra.mxu0 %v2391
    %2401 = vmatpush.bf16.msra.mxu0 %v2390
    %2402 = vmatpush.bf16.msra.mxu0 %v2389
    %2403 = vmatpush.bf16.msra.mxu0 %v2388
    %2404 = vmatpush.bf16.msra.mxu0 %v2387
    %2405 = vmatpush.bf16.msra.mxu0 %v2386
    %2406 = vmatpush.bf16.msra.mxu0 %v2385
    %2407 = vmatpush.bf16.msra.mxu0 %v2384
    %2408 = vmatmul.bf16.gmra.mxu0 %v2349
    %v2409 = vpop.f32.mrf.mxu0
    %v2410 = vadd.f32 %v2351, %v2409
    %v2411 = vpop.f32.mrf.mxu0
    %v2412 = vadd.f32 %v2351, %v2411
    %2413 = vdwg.mxu0
    %v2414 = vadd.f32 %v2229, %v2410
    %v2415 = vadd.f32 %v2230, %v2412
    %2418 = vrot.lane.b32.xlu0 %v947, 32
    %v2419 = vpop.permute.xlu0 %2418
    %2420 = vrot.lane.b32.xlu0 %v948, 32
    %v2421 = vpop.permute.xlu0 %2420
    %2426 = vrot.lane.b32.xlu0 %v1269, 48
    %v2427 = vpop.permute.xlu0 %2426
    %2428 = vrot.lane.b32.xlu0 %v1270, 48
    %v2429 = vpop.permute.xlu0 %2428
    %2434 = vrot.lane.b32.xlu0 %v1159, 48
    %v2435 = vpop.permute.xlu0 %2434
    %2436 = vrot.lane.b32.xlu0 %v1174, 48
    %v2437 = vpop.permute.xlu0 %2436
    %2442 = vrot.lane.b32.xlu0 %v1101, 54
    %v2443 = vpop.permute.xlu0 %2442
    %2444 = vrot.lane.b32.xlu0 %v1116, 54
    %v2445 = vpop.permute.xlu0 %2444
    %2448 = vrot.lane.b32.xlu0 %v1159, 54
    %v2449 = vpop.permute.xlu0 %2448
    %2450 = vrot.lane.b32.xlu0 %v1174, 54
    %v2451 = vpop.permute.xlu0 %2450
    %v2454 = vsel %vm58, %v2414, %v2419
    %v2455 = vsel %vm58, %v2415, %v2421
    %vm2456 = vcmask 392192
    %v2457 = vsel %vm2456, %v2454, %v2427
    %v2458 = vsel %vm2456, %v2455, %v2429
    %vm2459 = vcmask 424960
    %v2460 = vsel %vm2459, %v2457, %v2435
    %v2461 = vsel %vm2459, %v2458, %v2437
    %vm2462 = vcmask 441344
    %v2463 = vsel %vm2462, %v2460, %v2443
    %v2464 = vsel %vm2462, %v2461, %v2445
    %vm2465 = vcmask 474112
    %v2466 = vsel %vm2465, %v2463, %v2449
    %v2467 = vsel %vm2465, %v2464, %v2451
    %vm2468 = vcmask 490496
    %v2469 = vsel %vm2468, %v2466, 0.0
    %v2470 = vsel %vm2468, %v2467, 0.0
    %2471 = vst [vmem:[#allocation2] sm:$0xff] %v2469
    %2472 = vst [vmem:[#allocation2 + $0x8] sm:$0xff] %v2470
    // Predicated region
    $region30: #{tpu_custom_call.1} parent=1 // pred_check
      _
    $region31: #{tpu_custom_call.1} parent=1 // pred_check_branch
      %2474 = sbr.rel (0) target = $region33
    $region32: #{tpu_custom_call.1} parent=1 // pred_region
      %2476 = vsyncadd [#allocation3], 0
      %s2477 = sshll.u32 [#allocation2], 4
      %s2478 = int_to_ptr.vmem [resolvable:$true] %s2477
      %s2479 = sshll.u32 %s7, 4
      %s2480 = int_to_ptr.hbm [resolvable:$true] %s2479
      %2485 = dma.vmem_to_hbm [thread:$0]  %s2478, 256, %s2480, [#allocation3], 128, 128, 8
    $region33: #{tpu_custom_call.1} parent=1 // pred_fallthru
      _
    // Predicated region
    $region34: #{tpu_custom_call.1} parent=1 // pred_check
      _
    $region35: #{tpu_custom_call.1} parent=1 // pred_check_branch
      %2487 = sbr.rel (0) target = $region37
    $region36: #{tpu_custom_call.1} parent=1 // pred_region
      %2489 = dma.done [#allocation3], 256
    $region37: #{tpu_custom_call.1} parent=1 // pred_fallthru
      _
    %2490 = vsyncpa [#allocation3], 1

</llo_original>
